<compile_context>
chip_gen: v5e
topology: v5e:2x2
jax: 0.10.0
libtpu: 0.0.40
codegen_flags: <defaults>
</compile_context>

<pallas_src>
import functools

import jax
import jax.numpy as jnp
from jax.experimental import pallas as pl
from jax.experimental.pallas import tpu as pltpu

LN_EPS = 1e-12


# ----------------------------- kernel helpers ------------------------------
def _layer_norm(x, gamma, beta):
    mu = jnp.mean(x, axis=-1, keepdims=True)
    var = jnp.mean((x - mu) ** 2, axis=-1, keepdims=True)
    inv = jax.lax.rsqrt(var + LN_EPS)
    return (x - mu) * inv * gamma + beta


def _gelu(x):
    # tanh approximation of GELU (BERT "gelu_new")
    c = 0.7978845608028654  # sqrt(2/pi)
    return 0.5 * x * (1.0 + jnp.tanh(c * (x + 0.044715 * x * x * x)))


# ------------------------------ fused kernel --------------------------------
def encoder_kernel(num_heads, seq_len, pooling_mode,
                   # inputs
                   x0_ref, mb_ref, eg_ref, eb_ref,
                   wqkv_ref, bqkv_ref, wo_ref, bo_ref, g1_ref, be1_ref,
                   w1_ref, b1_ref, w2_ref, b2_ref, g2_ref, be2_ref,
                   # outputs / scratch
                   out_ref, x_vmem):
    l = pl.program_id(1)
    num_layers = pl.num_programs(1)

    rows, H = x_vmem.shape                 # rows = batch_tile * seq_len
    B = rows // seq_len
    dh = H // num_heads

    # --- first layer of this batch tile: fold in the embedding layernorm ---
    @pl.when(l == 0)
    def _():
        x_vmem[...] = _layer_norm(x0_ref[...].astype(jnp.float32),
                                  eg_ref[...], eb_ref[...])

    x = x_vmem[...]                        # (rows, H) f32, VMEM-resident
    xb = x.astype(jnp.bfloat16)

    # --- fused QKV projection: one (rows, H) @ (H, 3H) MXU pass ------------
    # (1/sqrt(dh) scale is pre-folded into the Wq/bq columns on the host.)
    qkv = jnp.dot(xb, wqkv_ref[0], preferred_element_type=jnp.float32)
    b3 = bqkv_ref[0]
    # bias-add + bf16 cast per-third so the full (rows, 3H) f32 temp is not
    # kept live alongside q/k/v.
    q = (qkv[:, 0 * H:1 * H] + b3[:, 0 * H:1 * H]).astype(jnp.bfloat16)
    k = (qkv[:, 1 * H:2 * H] + b3[:, 1 * H:2 * H]).astype(jnp.bfloat16)
    v = (qkv[:, 2 * H:3 * H] + b3[:, 2 * H:3 * H]).astype(jnp.bfloat16)

    q3 = q.reshape(B, seq_len, H)
    k3 = k.reshape(B, seq_len, H)
    v3 = v.reshape(B, seq_len, H)

    # mask broadcast hoisted out of the head loop (materialized once)
    mb = jnp.broadcast_to(mb_ref[...], (B, seq_len, seq_len))   # (B, S, S) f32

    # --- multi-head attention, batched over B ------------------------------
    ctx_heads = []
    for h in range(num_heads):
        sl = slice(h * dh, (h + 1) * dh)
        s = jnp.einsum('bqd,bkd->bqk', q3[:, :, sl], k3[:, :, sl],
                       preferred_element_type=jnp.float32)        # (B, S, S)
        s = s + mb
        m = jnp.max(s, axis=-1, keepdims=True)
        e = jnp.exp(s - m)
        p = e * pl.reciprocal(jnp.sum(e, axis=-1, keepdims=True), approx=True)
        ctx_heads.append(
            jnp.einsum('bqk,bkd->bqd', p.astype(jnp.bfloat16), v3[:, :, sl],
                       preferred_element_type=jnp.float32).astype(jnp.bfloat16))
    # single K=H output projection instead of num_heads K=dh matmuls
    ctx = jnp.concatenate(ctx_heads, axis=-1).reshape(rows, H)     # bf16
    attn = jnp.dot(ctx, wo_ref[0], preferred_element_type=jnp.float32) + bo_ref[0]

    h1 = _layer_norm(x + attn, g1_ref[0], be1_ref[0])

    # --- feed-forward -------------------------------------------------------
    ff = _gelu(jnp.dot(h1.astype(jnp.bfloat16), w1_ref[0],
                       preferred_element_type=jnp.float32) + b1_ref[0])
    ff = jnp.dot(ff.astype(jnp.bfloat16), w2_ref[0],
                 preferred_element_type=jnp.float32) + b2_ref[0]
    y = _layer_norm(h1 + ff, g2_ref[0], be2_ref[0])
    x_vmem[...] = y                        # stays resident for the next layer

    # --- last layer: fused pooling, write the (batch_tile, H) embedding -----
    @pl.when(l == num_layers - 1)
    def _():
        h3 = y.reshape(B, seq_len, H)
        if pooling_mode == 'cls':
            out_ref[...] = h3[:, 0:1, :].reshape(B, H)     # hidden_states[:, 0, :]
        else:  # 'mean'  (plain mean over seq, matching the PyTorch spec)
            out_ref[...] = jnp.mean(h3, axis=1)


# --------------------------- tuning heuristics -------------------------------
def _vmem_limit_bytes():
    """Explicit scoped-VMEM limit: ~100 MiB on 128-MiB parts, ~56 MiB on v7x."""
    try:
        cap = int(pltpu.get_tpu_info().vmem_capacity_bytes)
    except Exception:
        return 64 << 20        # conservative fallback, fine at demo scale
    if cap >= (96 << 20):
        return cap - (28 << 20)            # ~100 MiB on v5e/v6e
    return max(cap - (8 << 20), 32 << 20)  # ~56 MiB on v7x


def _num_tensorcores():
    """Best-effort detection of dual-TensorCore parts (megacore / v7x)."""
    try:
        kind = jax.devices()[0].device_kind.lower()
    except Exception:
        return 1
    if any(t in kind for t in ("v4", "v5p", "7")):
        return 2
    return 1


def _pick_batch_tile(B, S, H, F, vmem_budget, num_tc):
    """Largest batch tile whose working set fits the VMEM budget.

    On dual-TC parts prefer >= 2 tiles so the 'parallel' batch axis shards
    across both TensorCores; on single-TC parts prefer a single tile so layer
    weights stream from HBM only once.
    """
    def tile_bytes(bt):
        rows = bt * S
        weights = 2 * 2 * (H * 3 * H + H * H + 2 * H * F)      # dbl-buffered bf16
        x0 = 2 * rows * H * 2                                   # bf16, dbl-buffered
        act = rows * H * 4                                      # resident scratch
        temps = rows * (3 * H + F + 2 * H) * 4                  # qkv / ffn / attn f32
        return weights + x0 + act + temps + (1 << 20)

    def legal(bt):
        # last-two-dims (8, lane) block legality for the x0 and out BlockSpecs
        ok_out = (bt % 8 == 0) or (bt == B)
        ok_x0 = ((bt * S) % 8 == 0) or (bt == B)
        return ok_out and ok_x0

    cands = [bt for bt in range(1, B + 1) if B % bt == 0 and legal(bt)]
    if not cands:
        return B
    fit = [bt for bt in cands if tile_bytes(bt) <= vmem_budget] or [min(cands)]
    if num_tc >= 2:
        multi = [bt for bt in fit if B // bt >= 2]
        if multi:
            return max(multi)
    return max(fit)


# ------------------------------ Pallas wrapper -------------------------------
def _const_spec(shape):
    zeros = (0,) * len(shape)
    return pl.BlockSpec(shape, lambda bi, l: zeros)


def _layer_spec(shape2d):
    return pl.BlockSpec((1,) + tuple(shape2d), lambda bi, l: (l, 0, 0))


def run_encoder(x_flat, mask_bias, emb_g, emb_b, stacked, *,
                num_heads, seq_len, pooling_mode, batch_tile=None):
    BS, H = x_flat.shape
    B = BS // seq_len
    L = stacked['wqkv'].shape[0]
    F = stacked['w1'].shape[2]

    vmem_limit = _vmem_limit_bytes()
    if batch_tile is None:
        batch_tile = _pick_batch_tile(B, seq_len, H, F,
                                      int(vmem_limit * 0.9), _num_tensorcores())
    assert B % batch_tile == 0
    nbt = B // batch_tile

    in_specs = [
        pl.BlockSpec((batch_tile * seq_len, H), lambda bi, l: (bi, 0)),    # x0 (bf16)
        pl.BlockSpec((batch_tile, 1, seq_len), lambda bi, l: (bi, 0, 0)),  # mask bias
        _const_spec((1, H)), _const_spec((1, H)),                          # emb LN g/b
        _layer_spec((H, 3 * H)), _layer_spec((1, 3 * H)),                  # Wqkv, bqkv
        _layer_spec((H, H)), _layer_spec((1, H)),                          # Wo, bo
        _layer_spec((1, H)), _layer_spec((1, H)),                          # LN1 g/b
        _layer_spec((H, F)), _layer_spec((1, F)),                          # W1, b1
        _layer_spec((F, H)), _layer_spec((1, H)),                          # W2, b2
        _layer_spec((1, H)), _layer_spec((1, H)),                          # LN2 g/b
    ]

    # advisory cost estimate for XLA scheduling around the long fused call
    flops_per_row_layer = (2 * H * 3 * H        # QKV
                           + 4 * seq_len * H    # QK^T + PV
                           + 2 * H * H          # Wo
                           + 4 * H * F)         # FFN
    weight_bytes = L * 2 * (H * 3 * H + H * H + 2 * H * F)
    cost = pl.CostEstimate(
        flops=int(BS * L * flops_per_row_layer),
        transcendentals=int(BS * L * (seq_len + F)),      # softmax exp + gelu tanh
        bytes_accessed=int(BS * H * 2 + B * seq_len * 4
                           + nbt * weight_bytes + B * H * 4))

    kernel = functools.partial(encoder_kernel, num_heads, seq_len, pooling_mode)
    return pl.pallas_call(
        kernel,
        out_shape=jax.ShapeDtypeStruct((B, H), jnp.float32),
        grid=(nbt, L),
        in_specs=in_specs,
        out_specs=pl.BlockSpec((batch_tile, H), lambda bi, l: (bi, 0)),
        scratch_shapes=[pltpu.VMEM((batch_tile * seq_len, H), jnp.float32)],
        compiler_params=pltpu.CompilerParams(
            dimension_semantics=("parallel", "arbitrary"),
            vmem_limit_bytes=int(vmem_limit)),
        cost_estimate=cost,
    )(x_flat, mask_bias, emb_g, emb_b,
      stacked['wqkv'], stacked['bqkv'], stacked['wo'], stacked['bo'],
      stacked['g1'], stacked['be1'], stacked['w1'], stacked['b1'],
      stacked['w2'], stacked['b2'], stacked['g2'], stacked['be2'])


def _stack_layers(layers, num_heads):
    """Stack per-layer params with a leading L axis; matmul weights -> bf16.

    The 1/sqrt(dh) attention scale is folded into the Wq / bq columns here
    (one-time host transform, removes a per-layer (rows, H) VALU multiply).
    """
    bf = jnp.bfloat16
    H = layers[0]['wq'].shape[0]
    dh = H // num_heads
    scale = 1.0 / float(dh) ** 0.5

    def st(name, dtype=None):
        a = jnp.stack([lp[name] for lp in layers], axis=0)
        return a.astype(dtype) if dtype is not None else a

    wqkv = jnp.stack([jnp.concatenate([lp['wq'] * scale, lp['wk'], lp['wv']], axis=1)
                      for lp in layers], axis=0).astype(bf)
    bqkv = jnp.stack([jnp.concatenate([lp['bq'] * scale, lp['bk'], lp['bv']], axis=1)
                      for lp in layers], axis=0)
    return {
        'wqkv': wqkv, 'bqkv': bqkv,
        'wo': st('wo', bf), 'bo': st('bo'),
        'g1': st('g1'), 'be1': st('be1'),
        'w1': st('w1', bf), 'b1': st('b1'),
        'w2': st('w2', bf), 'b2': st('b2'),
        'g2': st('g2'), 'be2': st('be2'),
    }


# ------------------------------- SentenceBERT -------------------------------
def sentence_bert_forward(params, input_ids, attention_mask=None,
                          token_type_ids=None, pooling_mode='cls', num_heads=2):
    if pooling_mode not in {'cls', 'mean'}:
        raise ValueError(f'`pooling_mode` should be "cls" or "mean", got `{pooling_mode}`')
    B, S = input_ids.shape
    H = params['word_emb'].shape[1]
    if attention_mask is None:
        attention_mask = jnp.ones((B, S), jnp.int32)
    if token_type_ids is None:
        token_type_ids = jnp.zeros((B, S), jnp.int32)

    # --- embeddings (table gathers are plain-JAX glue) ---
    positions = jnp.arange(S, dtype=jnp.int32)
    x = (jnp.take(params['word_emb'], input_ids, axis=0)
         + jnp.take(params['pos_emb'], positions, axis=0)[None, :, :]
         + jnp.take(params['type_emb'], token_type_ids, axis=0))
    # bf16 into the kernel (halves the resident x0 block); layernorm is f32 inside.
    x_flat = x.astype(jnp.bfloat16).reshape(B * S, H)

    # attention mask -> additive bias (1 = keep, 0 = mask), broadcast over heads
    mask_bias = ((1.0 - attention_mask.astype(jnp.float32)) * -1e9)[:, None, :]

    stacked = _stack_layers(params['layers'], num_heads)

    # fused encoder + pooling (single pallas_call).  DeQuantStub is identity.
    return run_encoder(x_flat, mask_bias, params['emb_g'], params['emb_b'],
                       stacked, num_heads=num_heads, seq_len=S,
                       pooling_mode=pooling_mode)


# --------------------------------- params -----------------------------------
def init_params(key, vocab=100, max_pos=16, type_vocab=2, H=32, F=64, L=2):
    ks = jax.random.split(key, 4 + 8 * L)
    std = 0.02
    params = {
        'word_emb': std * jax.random.normal(ks[0], (vocab, H), jnp.float32),
        'pos_emb':  std * jax.random.normal(ks[1], (max_pos, H), jnp.float32),
        'type_emb': std * jax.random.normal(ks[2], (type_vocab, H), jnp.float32),
        'emb_g': jnp.ones((1, H), jnp.float32),
        'emb_b': jnp.zeros((1, H), jnp.float32),
        'layers': [],
    }
    ki = 4
    for _ in range(L):
        lp = {
            'wq': std * jax.random.normal(ks[ki + 0], (H, H), jnp.float32),
            'wk': std * jax.random.normal(ks[ki + 1], (H, H), jnp.float32),
            'wv': std * jax.random.normal(ks[ki + 2], (H, H), jnp.float32),
            'wo': std * jax.random.normal(ks[ki + 3], (H, H), jnp.float32),
            'bq': jnp.zeros((1, H), jnp.float32),
            'bk': jnp.zeros((1, H), jnp.float32),
            'bv': jnp.zeros((1, H), jnp.float32),
            'bo': jnp.zeros((1, H), jnp.float32),
            'g1': jnp.ones((1, H), jnp.float32),
            'be1': jnp.zeros((1, H), jnp.float32),
            'w1': std * jax.random.normal(ks[ki + 4], (H, F), jnp.float32),
            'b1': jnp.zeros((1, F), jnp.float32),
            'w2': std * jax.random.normal(ks[ki + 5], (F, H), jnp.float32),
            'b2': jnp.zeros((1, H), jnp.float32),
            'g2': jnp.ones((1, H), jnp.float32),
            'be2': jnp.zeros((1, H), jnp.float32),
        }
        ki += 8
        params['layers'].append(lp)
    return params


# ----------------------------------- main ------------------------------------
if __name__ == "__main__":
    # NOTE: demo dims are a smoke test; for real runs use lane-aligned dims
    # (H, 3H, F multiples of 128, dh >= 64).
    B, S, H, F, L, VOCAB, NUM_HEADS = 2, 8, 32, 64, 2, 100, 2

    key = jax.random.PRNGKey(0)
    pkey, ikey = jax.random.split(key)
    params = init_params(pkey, vocab=VOCAB, max_pos=S, H=H, F=F, L=L)

    input_ids = jax.random.randint(ikey, (B, S), 0, VOCAB, dtype=jnp.int32)
    attention_mask = jnp.ones((B, S), jnp.int32).at[1, -2:].set(0)  # mask tail of seq 1
    token_type_ids = jnp.zeros((B, S), jnp.int32)

    emb_cls = sentence_bert_forward(params, input_ids, attention_mask,
                                    token_type_ids, pooling_mode='cls',
                                    num_heads=NUM_HEADS)
    emb_mean = sentence_bert_forward(params, input_ids, attention_mask,
                                     token_type_ids, pooling_mode='mean',
                                     num_heads=NUM_HEADS)
    jax.block_until_ready(emb_cls)
    jax.block_until_ready(emb_mean)

    assert emb_cls.shape == (B, H) and emb_mean.shape == (B, H)
    assert bool(jnp.all(jnp.isfinite(emb_cls))) and bool(jnp.all(jnp.isfinite(emb_mean)))
    print("KERNEL_OK")
</pallas_src>

<mosaic_0001>
module attributes {stable_mosaic.version = 11 : i64} {
  func.func @encoder_kernel(%arg0: i32, %arg1: i32, %arg2: memref<16x32xbf16, #tpu.memory_space<vmem>>, %arg3: memref<2x1x8xf32, #tpu.memory_space<vmem>>, %arg4: memref<1x32xf32, #tpu.memory_space<vmem>>, %arg5: memref<1x32xf32, #tpu.memory_space<vmem>>, %arg6: memref<1x32x96xbf16, #tpu.memory_space<vmem>>, %arg7: memref<1x1x96xf32, #tpu.memory_space<vmem>>, %arg8: memref<1x32x32xbf16, #tpu.memory_space<vmem>>, %arg9: memref<1x1x32xf32, #tpu.memory_space<vmem>>, %arg10: memref<1x1x32xf32, #tpu.memory_space<vmem>>, %arg11: memref<1x1x32xf32, #tpu.memory_space<vmem>>, %arg12: memref<1x32x64xbf16, #tpu.memory_space<vmem>>, %arg13: memref<1x1x64xf32, #tpu.memory_space<vmem>>, %arg14: memref<1x64x32xbf16, #tpu.memory_space<vmem>>, %arg15: memref<1x1x32xf32, #tpu.memory_space<vmem>>, %arg16: memref<1x1x32xf32, #tpu.memory_space<vmem>>, %arg17: memref<1x1x32xf32, #tpu.memory_space<vmem>>, %arg18: memref<2x32xf32, #tpu.memory_space<vmem>>, %arg19: memref<16x32xf32, #tpu.memory_space<vmem>>) attributes {dimension_semantics = [#tpu.dimension_semantics<parallel>, #tpu.dimension_semantics<arbitrary>], iteration_bounds = array<i64: 1, 2>, scalar_prefetch = 0 : i64, scratch_operands = 1 : i64, tpu.core_type = #tpu.core_type<tc>, window_params = [{transform_indices = @transform_0, window_bounds = array<i64: 16, 32>}, {transform_indices = @transform_1, window_bounds = array<i64: 2, 1, 8>}, {pipeline_mode = #tpu.pipeline_mode<synchronous>, transform_indices = @transform_2, window_bounds = array<i64: 1, 32>}, {pipeline_mode = #tpu.pipeline_mode<synchronous>, transform_indices = @transform_3, window_bounds = array<i64: 1, 32>}, {transform_indices = @transform_4, window_bounds = array<i64: 1, 32, 96>}, {transform_indices = @transform_5, window_bounds = array<i64: 1, 1, 96>}, {transform_indices = @transform_6, window_bounds = array<i64: 1, 32, 32>}, {transform_indices = @transform_7, window_bounds = array<i64: 1, 1, 32>}, {transform_indices = @transform_8, window_bounds = array<i64: 1, 1, 32>}, {transform_indices = @transform_9, window_bounds = array<i64: 1, 1, 32>}, {transform_indices = @transform_10, window_bounds = array<i64: 1, 32, 64>}, {transform_indices = @transform_11, window_bounds = array<i64: 1, 1, 64>}, {transform_indices = @transform_12, window_bounds = array<i64: 1, 64, 32>}, {transform_indices = @transform_13, window_bounds = array<i64: 1, 1, 32>}, {transform_indices = @transform_14, window_bounds = array<i64: 1, 1, 32>}, {transform_indices = @transform_15, window_bounds = array<i64: 1, 1, 32>}, {transform_indices = @transform_16, window_bounds = array<i64: 2, 32>}]} {
    %c0_i32 = arith.constant 0 : i32
    %0 = arith.cmpi eq, %arg1, %c0_i32 : i32
    %1 = arith.extui %0 : i1 to i32
    %c0_i32_0 = arith.constant 0 : i32
    %2 = arith.cmpi ne, %1, %c0_i32_0 : i32
    scf.if %2 {
      %c0_69 = arith.constant 0 : index
      %c0_70 = arith.constant 0 : index
      %163 = vector.load %arg2[%c0_69, %c0_70] : memref<16x32xbf16, #tpu.memory_space<vmem>>, vector<16x32xbf16>
      %164 = arith.extf %163 : vector<16x32xbf16> to vector<16x32xf32>
      %c0_71 = arith.constant 0 : index
      %c0_72 = arith.constant 0 : index
      %165 = vector.load %arg4[%c0_71, %c0_72] : memref<1x32xf32, #tpu.memory_space<vmem>>, vector<1x32xf32>
      %c0_73 = arith.constant 0 : index
      %c0_74 = arith.constant 0 : index
      %166 = vector.load %arg5[%c0_73, %c0_74] : memref<1x32xf32, #tpu.memory_space<vmem>>, vector<1x32xf32>
      %cst_75 = arith.constant dense<0.000000e+00> : vector<16xf32>
      %167 = vector.multi_reduction <add>, %164, %cst_75 [1] : vector<16x32xf32> to vector<16xf32>
      %168 = vector.shape_cast %167 : vector<16xf32> to vector<16x1xf32>
      %cst_76 = arith.constant 3.200000e+01 : f32
      %169 = vector.broadcast %cst_76 : f32 to vector<16x1xf32>
      %170 = arith.divf %168, %169 : vector<16x1xf32>
      %171 = vector.broadcast %170 : vector<16x1xf32> to vector<16x32xf32>
      %172 = arith.subf %164, %171 : vector<16x32xf32>
      %173 = arith.mulf %172, %172 : vector<16x32xf32>
      %cst_77 = arith.constant dense<0.000000e+00> : vector<16xf32>
      %174 = vector.multi_reduction <add>, %173, %cst_77 [1] : vector<16x32xf32> to vector<16xf32>
      %175 = vector.shape_cast %174 : vector<16xf32> to vector<16x1xf32>
      %cst_78 = arith.constant 3.200000e+01 : f32
      %176 = vector.broadcast %cst_78 : f32 to vector<16x1xf32>
      %177 = arith.divf %175, %176 : vector<16x1xf32>
      %cst_79 = arith.constant 9.99999996E-13 : f32
      %178 = vector.broadcast %cst_79 : f32 to vector<16x1xf32>
      %179 = arith.addf %177, %178 : vector<16x1xf32>
      %180 = math.rsqrt %179 : vector<16x1xf32>
      %181 = vector.broadcast %170 : vector<16x1xf32> to vector<16x32xf32>
      %182 = arith.subf %164, %181 : vector<16x32xf32>
      %183 = vector.broadcast %180 : vector<16x1xf32> to vector<16x32xf32>
      %184 = arith.mulf %182, %183 : vector<16x32xf32>
      %185 = vector.broadcast %165 : vector<1x32xf32> to vector<16x32xf32>
      %186 = arith.mulf %184, %185 : vector<16x32xf32>
      %187 = vector.broadcast %166 : vector<1x32xf32> to vector<16x32xf32>
      %188 = arith.addf %186, %187 : vector<16x32xf32>
      %c0_80 = arith.constant 0 : index
      %c0_81 = arith.constant 0 : index
      %189 = vector.load %arg19[%c0_80, %c0_81] : memref<16x32xf32, #tpu.memory_space<vmem>>, vector<16x32xf32>
      tpu.vector_store %arg19[%c0_80, %c0_81], %188 {strides = array<i32>} : memref<16x32xf32, #tpu.memory_space<vmem>>, vector<16x32xf32>,
    } else {
    }
    %c0 = arith.constant 0 : index
    %c0_1 = arith.constant 0 : index
    %3 = vector.load %arg19[%c0, %c0_1] : memref<16x32xf32, #tpu.memory_space<vmem>>, vector<16x32xf32>
    %4 = arith.truncf %3 : vector<16x32xf32> to vector<16x32xbf16>
    %c0_2 = arith.constant 0 : index
    %c0_3 = arith.constant 0 : index
    %c0_4 = arith.constant 0 : index
    %5 = vector.load %arg6[%c0_2, %c0_3, %c0_4] : memref<1x32x96xbf16, #tpu.memory_space<vmem>>, vector<1x32x96xbf16>
    %6 = vector.shape_cast %5 : vector<1x32x96xbf16> to vector<32x96xbf16>
    %cst = arith.constant dense<0.000000e+00> : vector<16x96xf32>
    %7 = tpu.matmul %4, %6, %cst {dimension_numbers = #tpu.dot_dimension_numbers<[1], [0], [0], [1], [0, 0, 1, 1], [], []>} : vector<16x32xbf16>, vector<32x96xbf16>, vector<16x96xf32> -> vector<16x96xf32>
    %c0_5 = arith.constant 0 : index
    %c0_6 = arith.constant 0 : index
    %c0_7 = arith.constant 0 : index
    %8 = vector.load %arg7[%c0_5, %c0_6, %c0_7] : memref<1x1x96xf32, #tpu.memory_space<vmem>>, vector<1x1x96xf32>
    %9 = vector.shape_cast %8 : vector<1x1x96xf32> to vector<1x96xf32>
    %10 = vector.extract_strided_slice %7 {offsets = [0, 0], sizes = [16, 32], strides = [1, 1]} : vector<16x96xf32> to vector<16x32xf32>
    %11 = vector.extract_strided_slice %9 {offsets = [0, 0], sizes = [1, 32], strides = [1, 1]} : vector<1x96xf32> to vector<1x32xf32>
    %12 = vector.broadcast %11 : vector<1x32xf32> to vector<16x32xf32>
    %13 = arith.addf %10, %12 : vector<16x32xf32>
    %14 = arith.truncf %13 : vector<16x32xf32> to vector<16x32xbf16>
    %15 = vector.extract_strided_slice %7 {offsets = [0, 32], sizes = [16, 32], strides = [1, 1]} : vector<16x96xf32> to vector<16x32xf32>
    %16 = vector.extract_strided_slice %9 {offsets = [0, 32], sizes = [1, 32], strides = [1, 1]} : vector<1x96xf32> to vector<1x32xf32>
    %17 = vector.broadcast %16 : vector<1x32xf32> to vector<16x32xf32>
    %18 = arith.addf %15, %17 : vector<16x32xf32>
    %19 = arith.truncf %18 : vector<16x32xf32> to vector<16x32xbf16>
    %20 = vector.extract_strided_slice %7 {offsets = [0, 64], sizes = [16, 32], strides = [1, 1]} : vector<16x96xf32> to vector<16x32xf32>
    %21 = vector.extract_strided_slice %9 {offsets = [0, 64], sizes = [1, 32], strides = [1, 1]} : vector<1x96xf32> to vector<1x32xf32>
    %22 = vector.broadcast %21 : vector<1x32xf32> to vector<16x32xf32>
    %23 = arith.addf %20, %22 : vector<16x32xf32>
    %24 = arith.truncf %23 : vector<16x32xf32> to vector<16x32xbf16>
    %25 = vector.shape_cast %14 : vector<16x32xbf16> to vector<2x8x32xbf16>
    %26 = vector.shape_cast %19 : vector<16x32xbf16> to vector<2x8x32xbf16>
    %27 = vector.shape_cast %24 : vector<16x32xbf16> to vector<2x8x32xbf16>
    %c0_8 = arith.constant 0 : index
    %c0_9 = arith.constant 0 : index
    %c0_10 = arith.constant 0 : index
    %28 = vector.load %arg3[%c0_8, %c0_9, %c0_10] : memref<2x1x8xf32, #tpu.memory_space<vmem>>, vector<2x1x8xf32>
    %29 = vector.shape_cast %28 : vector<2x1x8xf32> to vector<2x1x8xf32>
    %30 = vector.broadcast %29 : vector<2x1x8xf32> to vector<2x8x8xf32>
    %31 = vector.extract_strided_slice %25 {offsets = [0, 0, 0], sizes = [2, 8, 16], strides = [1, 1, 1]} : vector<2x8x32xbf16> to vector<2x8x16xbf16>
    %32 = vector.extract_strided_slice %26 {offsets = [0, 0, 0], sizes = [2, 8, 16], strides = [1, 1, 1]} : vector<2x8x32xbf16> to vector<2x8x16xbf16>
    "tpu.trace_start"() <{level = 10 : i32, message = "bqd,bkd->bqk"}> : () -> ()
    %cst_11 = arith.constant dense<0.000000e+00> : vector<2x8x8xf32>
    %33 = tpu.matmul %31, %32, %cst_11 {dimension_numbers = #tpu.dot_dimension_numbers<[2], [2], [1], [1], [0, 0, 0, 1, 1, 1], [0], [0]>} : vector<2x8x16xbf16>, vector<2x8x16xbf16>, vector<2x8x8xf32> -> vector<2x8x8xf32>
    "tpu.trace_stop"() : () -> ()
    %34 = arith.addf %33, %30 : vector<2x8x8xf32>
    %cst_12 = arith.constant dense<0xFF800000> : vector<2x8xf32>
    %35 = vector.multi_reduction <maximumf>, %34, %cst_12 [2] : vector<2x8x8xf32> to vector<2x8xf32>
    %36 = vector.shape_cast %35 : vector<2x8xf32> to vector<2x8x1xf32>
    %37 = vector.broadcast %36 : vector<2x8x1xf32> to vector<2x8x8xf32>
    %38 = arith.subf %34, %37 : vector<2x8x8xf32>
    %39 = math.exp %38 : vector<2x8x8xf32>
    %cst_13 = arith.constant dense<0.000000e+00> : vector<2x8xf32>
    %40 = vector.multi_reduction <add>, %39, %cst_13 [2] : vector<2x8x8xf32> to vector<2x8xf32>
    %41 = vector.shape_cast %40 : vector<2x8xf32> to vector<2x8x1xf32>
    %42 = tpu.reciprocal %41 {approx = true} : vector<2x8x1xf32> -> vector<2x8x1xf32>
    %43 = vector.broadcast %42 : vector<2x8x1xf32> to vector<2x8x8xf32>
    %44 = arith.mulf %39, %43 : vector<2x8x8xf32>
    %45 = arith.truncf %44 : vector<2x8x8xf32> to vector<2x8x8xbf16>
    %46 = vector.extract_strided_slice %27 {offsets = [0, 0, 0], sizes = [2, 8, 16], strides = [1, 1, 1]} : vector<2x8x32xbf16> to vector<2x8x16xbf16>
    "tpu.trace_start"() <{level = 10 : i32, message = "bqk,bkd->bqd"}> : () -> ()
    %cst_14 = arith.constant dense<0.000000e+00> : vector<2x8x16xf32>
    %47 = tpu.matmul %45, %46, %cst_14 {dimension_numbers = #tpu.dot_dimension_numbers<[2], [1], [1], [2], [0, 0, 0, 1, 1, 2], [0], [0]>} : vector<2x8x8xbf16>, vector<2x8x16xbf16>, vector<2x8x16xf32> -> vector<2x8x16xf32>
    "tpu.trace_stop"() : () -> ()
    %48 = arith.truncf %47 : vector<2x8x16xf32> to vector<2x8x16xbf16>
    %49 = vector.extract_strided_slice %25 {offsets = [0, 0, 16], sizes = [2, 8, 16], strides = [1, 1, 1]} : vector<2x8x32xbf16> to vector<2x8x16xbf16>
    %50 = vector.extract_strided_slice %26 {offsets = [0, 0, 16], sizes = [2, 8, 16], strides = [1, 1, 1]} : vector<2x8x32xbf16> to vector<2x8x16xbf16>
    "tpu.trace_start"() <{level = 10 : i32, message = "bqd,bkd->bqk"}> : () -> ()
    %cst_15 = arith.constant dense<0.000000e+00> : vector<2x8x8xf32>
    %51 = tpu.matmul %49, %50, %cst_15 {dimension_numbers = #tpu.dot_dimension_numbers<[2], [2], [1], [1], [0, 0, 0, 1, 1, 1], [0], [0]>} : vector<2x8x16xbf16>, vector<2x8x16xbf16>, vector<2x8x8xf32> -> vector<2x8x8xf32>
    "tpu.trace_stop"() : () -> ()
    %52 = arith.addf %51, %30 : vector<2x8x8xf32>
    %cst_16 = arith.constant dense<0xFF800000> : vector<2x8xf32>
    %53 = vector.multi_reduction <maximumf>, %52, %cst_16 [2] : vector<2x8x8xf32> to vector<2x8xf32>
    %54 = vector.shape_cast %53 : vector<2x8xf32> to vector<2x8x1xf32>
    %55 = vector.broadcast %54 : vector<2x8x1xf32> to vector<2x8x8xf32>
    %56 = arith.subf %52, %55 : vector<2x8x8xf32>
    %57 = math.exp %56 : vector<2x8x8xf32>
    %cst_17 = arith.constant dense<0.000000e+00> : vector<2x8xf32>
    %58 = vector.multi_reduction <add>, %57, %cst_17 [2] : vector<2x8x8xf32> to vector<2x8xf32>
    %59 = vector.shape_cast %58 : vector<2x8xf32> to vector<2x8x1xf32>
    %60 = tpu.reciprocal %59 {approx = true} : vector<2x8x1xf32> -> vector<2x8x1xf32>
    %61 = vector.broadcast %60 : vector<2x8x1xf32> to vector<2x8x8xf32>
    %62 = arith.mulf %57, %61 : vector<2x8x8xf32>
    %63 = arith.truncf %62 : vector<2x8x8xf32> to vector<2x8x8xbf16>
    %64 = vector.extract_strided_slice %27 {offsets = [0, 0, 16], sizes = [2, 8, 16], strides = [1, 1, 1]} : vector<2x8x32xbf16> to vector<2x8x16xbf16>
    "tpu.trace_start"() <{level = 10 : i32, message = "bqk,bkd->bqd"}> : () -> ()
    %cst_18 = arith.constant dense<0.000000e+00> : vector<2x8x16xf32>
    %65 = tpu.matmul %63, %64, %cst_18 {dimension_numbers = #tpu.dot_dimension_numbers<[2], [1], [1], [2], [0, 0, 0, 1, 1, 2], [0], [0]>} : vector<2x8x8xbf16>, vector<2x8x16xbf16>, vector<2x8x16xf32> -> vector<2x8x16xf32>
    "tpu.trace_stop"() : () -> ()
    %66 = arith.truncf %65 : vector<2x8x16xf32> to vector<2x8x16xbf16>
    %67 = tpu.concatenate %48, %66 in 2 : vector<2x8x16xbf16>, vector<2x8x16xbf16> -> vector<2x8x32xbf16>
    %68 = vector.shape_cast %67 : vector<2x8x32xbf16> to vector<16x32xbf16>
    %c0_19 = arith.constant 0 : index
    %c0_20 = arith.constant 0 : index
    %c0_21 = arith.constant 0 : index
    %69 = vector.load %arg8[%c0_19, %c0_20, %c0_21] : memref<1x32x32xbf16, #tpu.memory_space<vmem>>, vector<1x32x32xbf16>
    %70 = vector.shape_cast %69 : vector<1x32x32xbf16> to vector<32x32xbf16>
    %cst_22 = arith.constant dense<0.000000e+00> : vector<16x32xf32>
    %71 = tpu.matmul %68, %70, %cst_22 {dimension_numbers = #tpu.dot_dimension_numbers<[1], [0], [0], [1], [0, 0, 1, 1], [], []>} : vector<16x32xbf16>, vector<32x32xbf16>, vector<16x32xf32> -> vector<16x32xf32>
    %c0_23 = arith.constant 0 : index
    %c0_24 = arith.constant 0 : index
    %c0_25 = arith.constant 0 : index
    %72 = vector.load %arg9[%c0_23, %c0_24, %c0_25] : memref<1x1x32xf32, #tpu.memory_space<vmem>>, vector<1x1x32xf32>
    %73 = vector.shape_cast %72 : vector<1x1x32xf32> to vector<1x32xf32>
    %74 = vector.broadcast %73 : vector<1x32xf32> to vector<16x32xf32>
    %75 = arith.addf %71, %74 : vector<16x32xf32>
    %76 = arith.addf %3, %75 : vector<16x32xf32>
    %c0_26 = arith.constant 0 : index
    %c0_27 = arith.constant 0 : index
    %c0_28 = arith.constant 0 : index
    %77 = vector.load %arg10[%c0_26, %c0_27, %c0_28] : memref<1x1x32xf32, #tpu.memory_space<vmem>>, vector<1x1x32xf32>
    %78 = vector.shape_cast %77 : vector<1x1x32xf32> to vector<1x32xf32>
    %c0_29 = arith.constant 0 : index
    %c0_30 = arith.constant 0 : index
    %c0_31 = arith.constant 0 : index
    %79 = vector.load %arg11[%c0_29, %c0_30, %c0_31] : memref<1x1x32xf32, #tpu.memory_space<vmem>>, vector<1x1x32xf32>
    %80 = vector.shape_cast %79 : vector<1x1x32xf32> to vector<1x32xf32>
    %cst_32 = arith.constant dense<0.000000e+00> : vector<16xf32>
    %81 = vector.multi_reduction <add>, %76, %cst_32 [1] : vector<16x32xf32> to vector<16xf32>
    %82 = vector.shape_cast %81 : vector<16xf32> to vector<16x1xf32>
    %cst_33 = arith.constant 3.200000e+01 : f32
    %83 = vector.broadcast %cst_33 : f32 to vector<16x1xf32>
    %84 = arith.divf %82, %83 : vector<16x1xf32>
    %85 = vector.broadcast %84 : vector<16x1xf32> to vector<16x32xf32>
    %86 = arith.subf %76, %85 : vector<16x32xf32>
    %87 = arith.mulf %86, %86 : vector<16x32xf32>
    %cst_34 = arith.constant dense<0.000000e+00> : vector<16xf32>
    %88 = vector.multi_reduction <add>, %87, %cst_34 [1] : vector<16x32xf32> to vector<16xf32>
    %89 = vector.shape_cast %88 : vector<16xf32> to vector<16x1xf32>
    %cst_35 = arith.constant 3.200000e+01 : f32
    %90 = vector.broadcast %cst_35 : f32 to vector<16x1xf32>
    %91 = arith.divf %89, %90 : vector<16x1xf32>
    %cst_36 = arith.constant 9.99999996E-13 : f32
    %92 = vector.broadcast %cst_36 : f32 to vector<16x1xf32>
    %93 = arith.addf %91, %92 : vector<16x1xf32>
    %94 = math.rsqrt %93 : vector<16x1xf32>
    %95 = vector.broadcast %84 : vector<16x1xf32> to vector<16x32xf32>
    %96 = arith.subf %76, %95 : vector<16x32xf32>
    %97 = vector.broadcast %94 : vector<16x1xf32> to vector<16x32xf32>
    %98 = arith.mulf %96, %97 : vector<16x32xf32>
    %99 = vector.broadcast %78 : vector<1x32xf32> to vector<16x32xf32>
    %100 = arith.mulf %98, %99 : vector<16x32xf32>
    %101 = vector.broadcast %80 : vector<1x32xf32> to vector<16x32xf32>
    %102 = arith.addf %100, %101 : vector<16x32xf32>
    %103 = arith.truncf %102 : vector<16x32xf32> to vector<16x32xbf16>
    %c0_37 = arith.constant 0 : index
    %c0_38 = arith.constant 0 : index
    %c0_39 = arith.constant 0 : index
    %104 = vector.load %arg12[%c0_37, %c0_38, %c0_39] : memref<1x32x64xbf16, #tpu.memory_space<vmem>>, vector<1x32x64xbf16>
    %105 = vector.shape_cast %104 : vector<1x32x64xbf16> to vector<32x64xbf16>
    %cst_40 = arith.constant dense<0.000000e+00> : vector<16x64xf32>
    %106 = tpu.matmul %103, %105, %cst_40 {dimension_numbers = #tpu.dot_dimension_numbers<[1], [0], [0], [1], [0, 0, 1, 1], [], []>} : vector<16x32xbf16>, vector<32x64xbf16>, vector<16x64xf32> -> vector<16x64xf32>
    %c0_41 = arith.constant 0 : index
    %c0_42 = arith.constant 0 : index
    %c0_43 = arith.constant 0 : index
    %107 = vector.load %arg13[%c0_41, %c0_42, %c0_43] : memref<1x1x64xf32, #tpu.memory_space<vmem>>, vector<1x1x64xf32>
    %108 = vector.shape_cast %107 : vector<1x1x64xf32> to vector<1x64xf32>
    %109 = vector.broadcast %108 : vector<1x64xf32> to vector<16x64xf32>
    %110 = arith.addf %106, %109 : vector<16x64xf32>
    %cst_44 = arith.constant 5.000000e-01 : f32
    %111 = vector.broadcast %cst_44 : f32 to vector<16x64xf32>
    %112 = arith.mulf %111, %110 : vector<16x64xf32>
    %cst_45 = arith.constant 4.471500e-02 : f32
    %113 = vector.broadcast %cst_45 : f32 to vector<16x64xf32>
    %114 = arith.mulf %113, %110 : vector<16x64xf32>
    %115 = arith.mulf %114, %110 : vector<16x64xf32>
    %116 = arith.mulf %115, %110 : vector<16x64xf32>
    %117 = arith.addf %110, %116 : vector<16x64xf32>
    %cst_46 = arith.constant 0.797884583 : f32
    %118 = vector.broadcast %cst_46 : f32 to vector<16x64xf32>
    %119 = arith.mulf %118, %117 : vector<16x64xf32>
    %120 = math.tanh %119 : vector<16x64xf32>
    %cst_47 = arith.constant 1.000000e+00 : f32
    %121 = vector.broadcast %cst_47 : f32 to vector<16x64xf32>
    %122 = arith.addf %121, %120 : vector<16x64xf32>
    %123 = arith.mulf %112, %122 : vector<16x64xf32>
    %124 = arith.truncf %123 : vector<16x64xf32> to vector<16x64xbf16>
    %c0_48 = arith.constant 0 : index
    %c0_49 = arith.constant 0 : index
    %c0_50 = arith.constant 0 : index
    %125 = vector.load %arg14[%c0_48, %c0_49, %c0_50] : memref<1x64x32xbf16, #tpu.memory_space<vmem>>, vector<1x64x32xbf16>
    %126 = vector.shape_cast %125 : vector<1x64x32xbf16> to vector<64x32xbf16>
    %cst_51 = arith.constant dense<0.000000e+00> : vector<16x32xf32>
    %127 = tpu.matmul %124, %126, %cst_51 {dimension_numbers = #tpu.dot_dimension_numbers<[1], [0], [0], [1], [0, 0, 1, 1], [], []>} : vector<16x64xbf16>, vector<64x32xbf16>, vector<16x32xf32> -> vector<16x32xf32>
    %c0_52 = arith.constant 0 : index
    %c0_53 = arith.constant 0 : index
    %c0_54 = arith.constant 0 : index
    %128 = vector.load %arg15[%c0_52, %c0_53, %c0_54] : memref<1x1x32xf32, #tpu.memory_space<vmem>>, vector<1x1x32xf32>
    %129 = vector.shape_cast %128 : vector<1x1x32xf32> to vector<1x32xf32>
    %130 = vector.broadcast %129 : vector<1x32xf32> to vector<16x32xf32>
    %131 = arith.addf %127, %130 : vector<16x32xf32>
    %132 = arith.addf %102, %131 : vector<16x32xf32>
    %c0_55 = arith.constant 0 : index
    %c0_56 = arith.constant 0 : index
    %c0_57 = arith.constant 0 : index
    %133 = vector.load %arg16[%c0_55, %c0_56, %c0_57] : memref<1x1x32xf32, #tpu.memory_space<vmem>>, vector<1x1x32xf32>
    %134 = vector.shape_cast %133 : vector<1x1x32xf32> to vector<1x32xf32>
    %c0_58 = arith.constant 0 : index
    %c0_59 = arith.constant 0 : index
    %c0_60 = arith.constant 0 : index
    %135 = vector.load %arg17[%c0_58, %c0_59, %c0_60] : memref<1x1x32xf32, #tpu.memory_space<vmem>>, vector<1x1x32xf32>
    %136 = vector.shape_cast %135 : vector<1x1x32xf32> to vector<1x32xf32>
    %cst_61 = arith.constant dense<0.000000e+00> : vector<16xf32>
    %137 = vector.multi_reduction <add>, %132, %cst_61 [1] : vector<16x32xf32> to vector<16xf32>
    %138 = vector.shape_cast %137 : vector<16xf32> to vector<16x1xf32>
    %cst_62 = arith.constant 3.200000e+01 : f32
    %139 = vector.broadcast %cst_62 : f32 to vector<16x1xf32>
    %140 = arith.divf %138, %139 : vector<16x1xf32>
    %141 = vector.broadcast %140 : vector<16x1xf32> to vector<16x32xf32>
    %142 = arith.subf %132, %141 : vector<16x32xf32>
    %143 = arith.mulf %142, %142 : vector<16x32xf32>
    %cst_63 = arith.constant dense<0.000000e+00> : vector<16xf32>
    %144 = vector.multi_reduction <add>, %143, %cst_63 [1] : vector<16x32xf32> to vector<16xf32>
    %145 = vector.shape_cast %144 : vector<16xf32> to vector<16x1xf32>
    %cst_64 = arith.constant 3.200000e+01 : f32
    %146 = vector.broadcast %cst_64 : f32 to vector<16x1xf32>
    %147 = arith.divf %145, %146 : vector<16x1xf32>
    %cst_65 = arith.constant 9.99999996E-13 : f32
    %148 = vector.broadcast %cst_65 : f32 to vector<16x1xf32>
    %149 = arith.addf %147, %148 : vector<16x1xf32>
    %150 = math.rsqrt %149 : vector<16x1xf32>
    %151 = vector.broadcast %140 : vector<16x1xf32> to vector<16x32xf32>
    %152 = arith.subf %132, %151 : vector<16x32xf32>
    %153 = vector.broadcast %150 : vector<16x1xf32> to vector<16x32xf32>
    %154 = arith.mulf %152, %153 : vector<16x32xf32>
    %155 = vector.broadcast %134 : vector<1x32xf32> to vector<16x32xf32>
    %156 = arith.mulf %154, %155 : vector<16x32xf32>
    %157 = vector.broadcast %136 : vector<1x32xf32> to vector<16x32xf32>
    %158 = arith.addf %156, %157 : vector<16x32xf32>
    %c0_66 = arith.constant 0 : index
    %c0_67 = arith.constant 0 : index
    %159 = vector.load %arg19[%c0_66, %c0_67] : memref<16x32xf32, #tpu.memory_space<vmem>>, vector<16x32xf32>
    tpu.vector_store %arg19[%c0_66, %c0_67], %158 {strides = array<i32>} : memref<16x32xf32, #tpu.memory_space<vmem>>, vector<16x32xf32>,
    %c1_i32 = arith.constant 1 : i32
    %160 = arith.cmpi eq, %arg1, %c1_i32 : i32
    %161 = arith.extui %160 : i1 to i32
    %c0_i32_68 = arith.constant 0 : i32
    %162 = arith.cmpi ne, %161, %c0_i32_68 : i32
    scf.if %162 {
      %163 = vector.shape_cast %158 : vector<16x32xf32> to vector<2x8x32xf32>
      %164 = vector.extract_strided_slice %163 {offsets = [0, 0, 0], sizes = [2, 1, 32], strides = [1, 1, 1]} : vector<2x8x32xf32> to vector<2x1x32xf32>
      %165 = vector.shape_cast %164 : vector<2x1x32xf32> to vector<2x32xf32>
      %c0_69 = arith.constant 0 : index
      %c0_70 = arith.constant 0 : index
      %166 = vector.load %arg18[%c0_69, %c0_70] : memref<2x32xf32, #tpu.memory_space<vmem>>, vector<2x32xf32>
      tpu.vector_store %arg18[%c0_69, %c0_70], %165 {strides = array<i32>} : memref<2x32xf32, #tpu.memory_space<vmem>>, vector<2x32xf32>,
    } else {
    }
    return
  }
  func.func @transform_0(%arg0: i32, %arg1: i32) -> (i32, i32) {
    %c0_i32 = arith.constant 0 : i32
    %c0_i32_0 = arith.constant 0 : i32
    return %arg0, %c0_i32 : i32, i32
  }
  func.func @transform_1(%arg0: i32, %arg1: i32) -> (i32, i32, i32) {
    %c0_i32 = arith.constant 0 : i32
    %c0_i32_0 = arith.constant 0 : i32
    %c0_i32_1 = arith.constant 0 : i32
    return %arg0, %c0_i32, %c0_i32_0 : i32, i32, i32
  }
  func.func @transform_2(%arg0: i32, %arg1: i32) -> (i32, i32) {
    %c0_i32 = arith.constant 0 : i32
    %c0_i32_0 = arith.constant 0 : i32
    %c0_i32_1 = arith.constant 0 : i32
    return %c0_i32, %c0_i32_0 : i32, i32
  }
  func.func @transform_3(%arg0: i32, %arg1: i32) -> (i32, i32) {
    %c0_i32 = arith.constant 0 : i32
    %c0_i32_0 = arith.constant 0 : i32
    %c0_i32_1 = arith.constant 0 : i32
    return %c0_i32, %c0_i32_0 : i32, i32
  }
  func.func @transform_4(%arg0: i32, %arg1: i32) -> (i32, i32, i32) {
    %c0_i32 = arith.constant 0 : i32
    %c0_i32_0 = arith.constant 0 : i32
    %c0_i32_1 = arith.constant 0 : i32
    return %arg1, %c0_i32, %c0_i32_0 : i32, i32, i32
  }
  func.func @transform_5(%arg0: i32, %arg1: i32) -> (i32, i32, i32) {
    %c0_i32 = arith.constant 0 : i32
    %c0_i32_0 = arith.constant 0 : i32
    %c0_i32_1 = arith.constant 0 : i32
    return %arg1, %c0_i32, %c0_i32_0 : i32, i32, i32
  }
  func.func @transform_6(%arg0: i32, %arg1: i32) -> (i32, i32, i32) {
    %c0_i32 = arith.constant 0 : i32
    %c0_i32_0 = arith.constant 0 : i32
    %c0_i32_1 = arith.constant 0 : i32
    return %arg1, %c0_i32, %c0_i32_0 : i32, i32, i32
  }
  func.func @transform_7(%arg0: i32, %arg1: i32) -> (i32, i32, i32) {
    %c0_i32 = arith.constant 0 : i32
    %c0_i32_0 = arith.constant 0 : i32
    %c0_i32_1 = arith.constant 0 : i32
    return %arg1, %c0_i32, %c0_i32_0 : i32, i32, i32
  }
  func.func @transform_8(%arg0: i32, %arg1: i32) -> (i32, i32, i32) {
    %c0_i32 = arith.constant 0 : i32
    %c0_i32_0 = arith.constant 0 : i32
    %c0_i32_1 = arith.constant 0 : i32
    return %arg1, %c0_i32, %c0_i32_0 : i32, i32, i32
  }
  func.func @transform_9(%arg0: i32, %arg1: i32) -> (i32, i32, i32) {
    %c0_i32 = arith.constant 0 : i32
    %c0_i32_0 = arith.constant 0 : i32
    %c0_i32_1 = arith.constant 0 : i32
    return %arg1, %c0_i32, %c0_i32_0 : i32, i32, i32
  }
  func.func @transform_10(%arg0: i32, %arg1: i32) -> (i32, i32, i32) {
    %c0_i32 = arith.constant 0 : i32
    %c0_i32_0 = arith.constant 0 : i32
    %c0_i32_1 = arith.constant 0 : i32
    return %arg1, %c0_i32, %c0_i32_0 : i32, i32, i32
  }
  func.func @transform_11(%arg0: i32, %arg1: i32) -> (i32, i32, i32) {
    %c0_i32 = arith.constant 0 : i32
    %c0_i32_0 = arith.constant 0 : i32
    %c0_i32_1 = arith.constant 0 : i32
    return %arg1, %c0_i32, %c0_i32_0 : i32, i32, i32
  }
  func.func @transform_12(%arg0: i32, %arg1: i32) -> (i32, i32, i32) {
    %c0_i32 = arith.constant 0 : i32
    %c0_i32_0 = arith.constant 0 : i32
    %c0_i32_1 = arith.constant 0 : i32
    return %arg1, %c0_i32, %c0_i32_0 : i32, i32, i32
  }
  func.func @transform_13(%arg0: i32, %arg1: i32) -> (i32, i32, i32) {
    %c0_i32 = arith.constant 0 : i32
    %c0_i32_0 = arith.constant 0 : i32
    %c0_i32_1 = arith.constant 0 : i32
    return %arg1, %c0_i32, %c0_i32_0 : i32, i32, i32
  }
  func.func @transform_14(%arg0: i32, %arg1: i32) -> (i32, i32, i32) {
    %c0_i32 = arith.constant 0 : i32
    %c0_i32_0 = arith.constant 0 : i32
    %c0_i32_1 = arith.constant 0 : i32
    return %arg1, %c0_i32, %c0_i32_0 : i32, i32, i32
  }
  func.func @transform_15(%arg0: i32, %arg1: i32) -> (i32, i32, i32) {
    %c0_i32 = arith.constant 0 : i32
    %c0_i32_0 = arith.constant 0 : i32
    %c0_i32_1 = arith.constant 0 : i32
    return %arg1, %c0_i32, %c0_i32_0 : i32, i32, i32
  }
  func.func @transform_16(%arg0: i32, %arg1: i32) -> (i32, i32) {
    %c0_i32 = arith.constant 0 : i32
    %c0_i32_0 = arith.constant 0 : i32
    return %arg0, %c0_i32 : i32, i32
  }
}

</mosaic_0001>

<llo_original>
// kernel: tpu_custom_call.1
$region0: #{tpu_custom_call.1}
  #allocation0 [shape = 'u32[]', space=smem, size = 0x4, offset = 0x4, fixed_abs, tag = 'smem constant byte address 0x4 - core index']
  #allocation1 [shape = 'u32[72,128]{1,0:T(1,128)}', space=vmem, size = 0x9000, scoped, tag = 'internal scratch']
  #allocation2 [shape = 'f32[16,32]{1,0:T(8,128)}', space=vmem, size = 0x2000, scoped, tag = 'scratch operand']
  %s0 = inlined_call_operand.hbm [shape: bf16[16,32], index: 0, kind: input, shape index: {}]
  %s1 = inlined_call_operand.hbm [shape: f32[2,1,8], index: 1, kind: input, shape index: {}]
  %s2 = inlined_call_operand.vmem [shape: f32[1,32], index: 2, kind: input, shape index: {}]
  %s3 = inlined_call_operand.hbm [shape: f32[1,32], index: 3, kind: input, shape index: {}]
  %s4 = inlined_call_operand.vmem [shape: bf16[2,32,96], index: 4, kind: input, shape index: {}]
  %s5 = inlined_call_operand.vmem [shape: f32[2,1,96], index: 5, kind: input, shape index: {}]
  %s6 = inlined_call_operand.vmem [shape: bf16[2,32,32], index: 6, kind: input, shape index: {}]
  %s7 = inlined_call_operand.vmem [shape: f32[2,1,32], index: 7, kind: input, shape index: {}]
  %s8 = inlined_call_operand.vmem [shape: f32[2,1,32], index: 8, kind: input, shape index: {}]
  %s9 = inlined_call_operand.hbm [shape: f32[2,1,32], index: 9, kind: input, shape index: {}]
  %s10 = inlined_call_operand.vmem [shape: bf16[2,32,64], index: 10, kind: input, shape index: {}]
  %s11 = inlined_call_operand.vmem [shape: f32[2,1,64], index: 11, kind: input, shape index: {}]
  %s12 = inlined_call_operand.vmem [shape: bf16[2,64,32], index: 12, kind: input, shape index: {}]
  %s13 = inlined_call_operand.vmem [shape: f32[2,1,32], index: 13, kind: input, shape index: {}]
  %s14 = inlined_call_operand.vmem [shape: f32[2,1,32], index: 14, kind: input, shape index: {}]
  %s15 = inlined_call_operand.hbm [shape: f32[2,1,32], index: 15, kind: input, shape index: {}]
  %s16 = inlined_call_operand.hbm [shape: f32[2,32], index: 16, kind: output, shape index: {}]
  %s17 = sld [smem:[#allocation0]]
  $region125: #{tpu_custom_call.1} parent=0
    _
  %s19 = ssub.s32 1, %s17
  %s20 = scalar_select 0, %s19, %s17
  $region1: #{tpu_custom_call.1} parent=0
    #allocation3 [shape = 'u8[4096]{0}', space=vmem, size = 0x1000, scoped, tag = 'input window, operand 0, single buffered']
    #allocation4 [shape = 's32[2]{0}', space=sflag, size = 0x8, scoped, tag = 'scoped memory for tpu_custom_call.1']
    #allocation5 [shape = 's32[2]{0}', space=sflag, size = 0x8, scoped, tag = 'scoped memory for tpu_custom_call.1']
    #allocation6 [shape = 'u8[1024]{0}', space=vmem, size = 0x400, scoped, tag = 'input window, operand 1, single buffered']
    #allocation7 [shape = 's32[1]{0}', space=sflag, size = 0x4, scoped, tag = 'scoped memory for tpu_custom_call.1']
    #allocation8 [shape = 'u8[512]{0}', space=vmem, size = 0x400, scoped, tag = 'input window, operand 3, single buffered']
    #allocation9 [shape = 'u8[1024]{0}', space=vmem, size = 0x400, scoped, tag = 'input window, operand 9']
    #allocation10 [shape = 's32[2]{0}', space=sflag, size = 0x8, scoped, tag = 'scoped memory for tpu_custom_call.1']
    #allocation11 [shape = 'u8[1024]{0}', space=vmem, size = 0x400, scoped, tag = 'input window, operand 15']
    #allocation12 [shape = 'u8[1024]{0}', space=vmem, size = 0x400, scoped, tag = 'output window, operand 0, single buffered']
    %21 = vsyncpa [#allocation4], 0
    %22 = vsyncpa [#allocation7], 0
    %23 = vsyncpa [#allocation10], 0
    %s24 = scalar_lea.sflag [#allocation10], 1
    %25 = vsyncpa %s24, 0
    %26 = vsyncpa [#allocation5], 0
    loop: start=0, step=1, limit=4
    $region2: #{tpu_custom_call.1} parent=1 // loop_pre_header
      _
    $region3: #{tpu_custom_call.1} parent=1 // loop_header
      %s28 = sphi 0, %s32
      %p29 = scmp.ge.s32.totalorder %s28, 4
      %s35 = sphi 0, %s47
      %s36 = sphi 0, %s43
      %s37 = sphi 0, %s35
      %s38 = sphi 0, %s36
      %s39 = sphi 0, %s37
      %s40 = sphi 0, %s38
      %s50 = sphi 0, %s52
      %s53 = sphi 0, %s50
      %s54 = sphi 0, %s53
      %s70 = sphi 0, %s54
      %s76 = sphi 0, %s78
      %s79 = sphi 0, %s76
      %s80 = sphi 0, %s79
      %s96 = sphi 0, %s80
      %s100 = sphi 0, %s100
      %s102 = sphi 0, %s100
      %s103 = sphi 0, %s102
      %s117 = sphi 0, %s103
      %s121 = sphi 0, %s121
      %s123 = sphi 0, %s121
      %s124 = sphi 0, %s123
      %s138 = sphi 0, %s124
      %s144 = sphi 0, %s146
      %s147 = sphi 0, %s144
      %s148 = sphi 0, %s147
      %s164 = sphi 0, %s148
      %s170 = sphi 0, %s172
      %s173 = sphi 0, %s170
      %s174 = sphi 0, %s173
      %s190 = sphi 0, %s174
      %s196 = sphi 0, %s198
      %s199 = sphi 0, %s196
      %s200 = sphi 0, %s199
      %s216 = sphi 0, %s200
      %s222 = sphi 0, %s224
      %s225 = sphi 0, %s222
      %s226 = sphi 0, %s225
      %s242 = sphi 0, %s226
      %s248 = sphi 0, %s250
      %s251 = sphi 0, %s248
      %s252 = sphi 0, %s251
      %s268 = sphi 0, %s252
      %s274 = sphi 0, %s276
      %s277 = sphi 0, %s274
      %s278 = sphi 0, %s277
      %s294 = sphi 0, %s278
      %s300 = sphi 0, %s302
      %s303 = sphi 0, %s300
      %s304 = sphi 0, %s303
      %s320 = sphi 0, %s304
      %s326 = sphi 0, %s328
      %s329 = sphi 0, %s326
      %s330 = sphi 0, %s329
      %s346 = sphi 0, %s330
      %s352 = sphi 0, %s354
      %s355 = sphi 0, %s352
      %s356 = sphi 0, %s355
      %s372 = sphi 0, %s356
      %s378 = sphi 0, %s380
      %s381 = sphi 0, %s378
      %s382 = sphi 0, %s381
      %s398 = sphi 0, %s382
      %s404 = sphi 0, %s406
      %s407 = sphi 0, %s404
      %s408 = sphi 0, %s407
      %s424 = sphi 0, %s408
      %s430 = sphi 0, %s432
      %s433 = sphi 0, %s430
      %s434 = sphi 0, %s433
      %s450 = sphi 0, %s434
      %s456 = sphi 0, %s458
      %s459 = sphi 0, %s456
      %s460 = sphi 0, %s459
      %s476 = sphi 0, %s460
    $region4: #{tpu_custom_call.1} parent=1 // loop_header_branch
      %31 = sbr.rel (%p29) target = $region8
    $region5: #{tpu_custom_call.1} parent=1 // loop_body
      %s33 = ssub.s32 %s28, 1
      %s34 = ssub.s32 %s28, 2
      %s41 = sadd.s32 1, %s36
      %p42 = scmp.ge.s32.totalorder %s41, 2
      %s43 = scalar_select %p42, 0, %s41
      %s44 = sadd.s32 1, %s35
      %s45 = scalar_select %p42, %s44, %s35
      %p46 = scmp.ge.s32.totalorder %s45, 1
      %s47 = scalar_select %p46, 0, %s45
      %s48 = ssub.s32 %s35, %s47
      %p49 = scmp.eq.s32.totalorder %s48, 0
      %s51 = sadd.s32 %s50, 1
      %s52 = scalar_select %p49, %s50, %s51
      %p55 = pneg %p49
      %p56 = scmp.eq.s32.totalorder %s28, 1
      %p57 = por %p55, %p56
      %p58 = scmp.ne.s32.totalorder %s50, %s53
      %p59 = scmp.eq.s32.totalorder %s28, 0
      %p60 = por %p58, %p59
      %p61 = scmp.ne.s32.totalorder %s50, %s53
      %p62 = scmp.eq.s32.totalorder %s33, 1
      %p63 = por %p61, %p62
      %p64 = scmp.ne.s32.totalorder %s53, %s54
      %p65 = scmp.eq.s32.totalorder %s33, 0
      %p66 = por %p64, %p65
      %p67 = scmp.ne.s32.totalorder %s53, %s54
      %p68 = scmp.eq.s32.totalorder %s34, 1
      %p69 = por %p67, %p68
      %p71 = scmp.ne.s32.totalorder %s54, %s70
      %p72 = scmp.eq.s32.totalorder %s34, 0
      %p73 = por %p71, %p72
      %s74 = ssub.s32 %s35, %s47
      %p75 = scmp.eq.s32.totalorder %s74, 0
      %s77 = sadd.s32 %s76, 1
      %s78 = scalar_select %p75, %s76, %s77
      %p81 = pneg %p75
      %p82 = scmp.eq.s32.totalorder %s28, 1
      %p83 = por %p81, %p82
      %p84 = scmp.ne.s32.totalorder %s76, %s79
      %p85 = scmp.eq.s32.totalorder %s28, 0
      %p86 = por %p84, %p85
      %p87 = scmp.ne.s32.totalorder %s76, %s79
      %p88 = scmp.eq.s32.totalorder %s33, 1
      %p89 = por %p87, %p88
      %p90 = scmp.ne.s32.totalorder %s79, %s80
      %p91 = scmp.eq.s32.totalorder %s33, 0
      %p92 = por %p90, %p91
      %p93 = scmp.ne.s32.totalorder %s79, %s80
      %p94 = scmp.eq.s32.totalorder %s34, 1
      %p95 = por %p93, %p94
      %p97 = scmp.ne.s32.totalorder %s80, %s96
      %p98 = scmp.eq.s32.totalorder %s34, 0
      %p99 = por %p97, %p98
      %s101 = sadd.s32 %s100, 1
      %p104 = scmp.eq.s32.totalorder %s28, 1
      %p105 = scmp.ne.s32.totalorder %s100, %s102
      %p106 = scmp.eq.s32.totalorder %s28, 0
      %p107 = por %p105, %p106
      %p108 = scmp.ne.s32.totalorder %s100, %s102
      %p109 = scmp.eq.s32.totalorder %s33, 1
      %p110 = por %p108, %p109
      %p111 = scmp.ne.s32.totalorder %s102, %s103
      %p112 = scmp.eq.s32.totalorder %s33, 0
      %p113 = por %p111, %p112
      %p114 = scmp.ne.s32.totalorder %s102, %s103
      %p115 = scmp.eq.s32.totalorder %s34, 1
      %p116 = por %p114, %p115
      %p118 = scmp.ne.s32.totalorder %s103, %s117
      %p119 = scmp.eq.s32.totalorder %s34, 0
      %p120 = por %p118, %p119
      %s122 = sadd.s32 %s121, 1
      %p125 = scmp.eq.s32.totalorder %s28, 1
      %p126 = scmp.ne.s32.totalorder %s121, %s123
      %p127 = scmp.eq.s32.totalorder %s28, 0
      %p128 = por %p126, %p127
      %p129 = scmp.ne.s32.totalorder %s121, %s123
      %p130 = scmp.eq.s32.totalorder %s33, 1
      %p131 = por %p129, %p130
      %p132 = scmp.ne.s32.totalorder %s123, %s124
      %p133 = scmp.eq.s32.totalorder %s33, 0
      %p134 = por %p132, %p133
      %p135 = scmp.ne.s32.totalorder %s123, %s124
      %p136 = scmp.eq.s32.totalorder %s34, 1
      %p137 = por %p135, %p136
      %p139 = scmp.ne.s32.totalorder %s124, %s138
      %p140 = scmp.eq.s32.totalorder %s34, 0
      %p141 = por %p139, %p140
      %s142 = ssub.s32 %s36, %s43
      %p143 = scmp.eq.s32.totalorder %s142, 0
      %s145 = sadd.s32 %s144, 1
      %s146 = scalar_select %p143, %s144, %s145
      %p149 = pneg %p143
      %p150 = scmp.eq.s32.totalorder %s28, 1
      %p151 = por %p149, %p150
      %p152 = scmp.ne.s32.totalorder %s144, %s147
      %p153 = scmp.eq.s32.totalorder %s28, 0
      %p154 = por %p152, %p153
      %p155 = scmp.ne.s32.totalorder %s144, %s147
      %p156 = scmp.eq.s32.totalorder %s33, 1
      %p157 = por %p155, %p156
      %p158 = scmp.ne.s32.totalorder %s147, %s148
      %p159 = scmp.eq.s32.totalorder %s33, 0
      %p160 = por %p158, %p159
      %p161 = scmp.ne.s32.totalorder %s147, %s148
      %p162 = scmp.eq.s32.totalorder %s34, 1
      %p163 = por %p161, %p162
      %p165 = scmp.ne.s32.totalorder %s148, %s164
      %p166 = scmp.eq.s32.totalorder %s34, 0
      %p167 = por %p165, %p166
      %s168 = ssub.s32 %s36, %s43
      %p169 = scmp.eq.s32.totalorder %s168, 0
      %s171 = sadd.s32 %s170, 1
      %s172 = scalar_select %p169, %s170, %s171
      %p175 = pneg %p169
      %p176 = scmp.eq.s32.totalorder %s28, 1
      %p177 = por %p175, %p176
      %p178 = scmp.ne.s32.totalorder %s170, %s173
      %p179 = scmp.eq.s32.totalorder %s28, 0
      %p180 = por %p178, %p179
      %p181 = scmp.ne.s32.totalorder %s170, %s173
      %p182 = scmp.eq.s32.totalorder %s33, 1
      %p183 = por %p181, %p182
      %p184 = scmp.ne.s32.totalorder %s173, %s174
      %p185 = scmp.eq.s32.totalorder %s33, 0
      %p186 = por %p184, %p185
      %p187 = scmp.ne.s32.totalorder %s173, %s174
      %p188 = scmp.eq.s32.totalorder %s34, 1
      %p189 = por %p187, %p188
      %p191 = scmp.ne.s32.totalorder %s174, %s190
      %p192 = scmp.eq.s32.totalorder %s34, 0
      %p193 = por %p191, %p192
      %s194 = ssub.s32 %s36, %s43
      %p195 = scmp.eq.s32.totalorder %s194, 0
      %s197 = sadd.s32 %s196, 1
      %s198 = scalar_select %p195, %s196, %s197
      %p201 = pneg %p195
      %p202 = scmp.eq.s32.totalorder %s28, 1
      %p203 = por %p201, %p202
      %p204 = scmp.ne.s32.totalorder %s196, %s199
      %p205 = scmp.eq.s32.totalorder %s28, 0
      %p206 = por %p204, %p205
      %p207 = scmp.ne.s32.totalorder %s196, %s199
      %p208 = scmp.eq.s32.totalorder %s33, 1
      %p209 = por %p207, %p208
      %p210 = scmp.ne.s32.totalorder %s199, %s200
      %p211 = scmp.eq.s32.totalorder %s33, 0
      %p212 = por %p210, %p211
      %p213 = scmp.ne.s32.totalorder %s199, %s200
      %p214 = scmp.eq.s32.totalorder %s34, 1
      %p215 = por %p213, %p214
      %p217 = scmp.ne.s32.totalorder %s200, %s216
      %p218 = scmp.eq.s32.totalorder %s34, 0
      %p219 = por %p217, %p218
      %s220 = ssub.s32 %s36, %s43
      %p221 = scmp.eq.s32.totalorder %s220, 0
      %s223 = sadd.s32 %s222, 1
      %s224 = scalar_select %p221, %s222, %s223
      %p227 = pneg %p221
      %p228 = scmp.eq.s32.totalorder %s28, 1
      %p229 = por %p227, %p228
      %p230 = scmp.ne.s32.totalorder %s222, %s225
      %p231 = scmp.eq.s32.totalorder %s28, 0
      %p232 = por %p230, %p231
      %p233 = scmp.ne.s32.totalorder %s222, %s225
      %p234 = scmp.eq.s32.totalorder %s33, 1
      %p235 = por %p233, %p234
      %p236 = scmp.ne.s32.totalorder %s225, %s226
      %p237 = scmp.eq.s32.totalorder %s33, 0
      %p238 = por %p236, %p237
      %p239 = scmp.ne.s32.totalorder %s225, %s226
      %p240 = scmp.eq.s32.totalorder %s34, 1
      %p241 = por %p239, %p240
      %p243 = scmp.ne.s32.totalorder %s226, %s242
      %p244 = scmp.eq.s32.totalorder %s34, 0
      %p245 = por %p243, %p244
      %s246 = ssub.s32 %s36, %s43
      %p247 = scmp.eq.s32.totalorder %s246, 0
      %s249 = sadd.s32 %s248, 1
      %s250 = scalar_select %p247, %s248, %s249
      %p253 = pneg %p247
      %p254 = scmp.eq.s32.totalorder %s28, 1
      %p255 = por %p253, %p254
      %p256 = scmp.ne.s32.totalorder %s248, %s251
      %p257 = scmp.eq.s32.totalorder %s28, 0
      %p258 = por %p256, %p257
      %p259 = scmp.ne.s32.totalorder %s248, %s251
      %p260 = scmp.eq.s32.totalorder %s33, 1
      %p261 = por %p259, %p260
      %p262 = scmp.ne.s32.totalorder %s251, %s252
      %p263 = scmp.eq.s32.totalorder %s33, 0
      %p264 = por %p262, %p263
      %p265 = scmp.ne.s32.totalorder %s251, %s252
      %p266 = scmp.eq.s32.totalorder %s34, 1
      %p267 = por %p265, %p266
      %p269 = scmp.ne.s32.totalorder %s252, %s268
      %p270 = scmp.eq.s32.totalorder %s34, 0
      %p271 = por %p269, %p270
      %s272 = ssub.s32 %s36, %s43
      %p273 = scmp.eq.s32.totalorder %s272, 0
      %s275 = sadd.s32 %s274, 1
      %s276 = scalar_select %p273, %s274, %s275
      %p279 = pneg %p273
      %p280 = scmp.eq.s32.totalorder %s28, 1
      %p281 = por %p279, %p280
      %p282 = scmp.ne.s32.totalorder %s274, %s277
      %p283 = scmp.eq.s32.totalorder %s28, 0
      %p284 = por %p282, %p283
      %p285 = scmp.ne.s32.totalorder %s274, %s277
      %p286 = scmp.eq.s32.totalorder %s33, 1
      %p287 = por %p285, %p286
      %p288 = scmp.ne.s32.totalorder %s277, %s278
      %p289 = scmp.eq.s32.totalorder %s33, 0
      %p290 = por %p288, %p289
      %p291 = scmp.ne.s32.totalorder %s277, %s278
      %p292 = scmp.eq.s32.totalorder %s34, 1
      %p293 = por %p291, %p292
      %p295 = scmp.ne.s32.totalorder %s278, %s294
      %p296 = scmp.eq.s32.totalorder %s34, 0
      %p297 = por %p295, %p296
      %s298 = ssub.s32 %s36, %s43
      %p299 = scmp.eq.s32.totalorder %s298, 0
      %s301 = sadd.s32 %s300, 1
      %s302 = scalar_select %p299, %s300, %s301
      %p305 = pneg %p299
      %p306 = scmp.eq.s32.totalorder %s28, 1
      %p307 = por %p305, %p306
      %p308 = scmp.ne.s32.totalorder %s300, %s303
      %p309 = scmp.eq.s32.totalorder %s28, 0
      %p310 = por %p308, %p309
      %p311 = scmp.ne.s32.totalorder %s300, %s303
      %p312 = scmp.eq.s32.totalorder %s33, 1
      %p313 = por %p311, %p312
      %p314 = scmp.ne.s32.totalorder %s303, %s304
      %p315 = scmp.eq.s32.totalorder %s33, 0
      %p316 = por %p314, %p315
      %p317 = scmp.ne.s32.totalorder %s303, %s304
      %p318 = scmp.eq.s32.totalorder %s34, 1
      %p319 = por %p317, %p318
      %p321 = scmp.ne.s32.totalorder %s304, %s320
      %p322 = scmp.eq.s32.totalorder %s34, 0
      %p323 = por %p321, %p322
      %s324 = ssub.s32 %s36, %s43
      %p325 = scmp.eq.s32.totalorder %s324, 0
      %s327 = sadd.s32 %s326, 1
      %s328 = scalar_select %p325, %s326, %s327
      %p331 = pneg %p325
      %p332 = scmp.eq.s32.totalorder %s28, 1
      %p333 = por %p331, %p332
      %p334 = scmp.ne.s32.totalorder %s326, %s329
      %p335 = scmp.eq.s32.totalorder %s28, 0
      %p336 = por %p334, %p335
      %p337 = scmp.ne.s32.totalorder %s326, %s329
      %p338 = scmp.eq.s32.totalorder %s33, 1
      %p339 = por %p337, %p338
      %p340 = scmp.ne.s32.totalorder %s329, %s330
      %p341 = scmp.eq.s32.totalorder %s33, 0
      %p342 = por %p340, %p341
      %p343 = scmp.ne.s32.totalorder %s329, %s330
      %p344 = scmp.eq.s32.totalorder %s34, 1
      %p345 = por %p343, %p344
      %p347 = scmp.ne.s32.totalorder %s330, %s346
      %p348 = scmp.eq.s32.totalorder %s34, 0
      %p349 = por %p347, %p348
      %s350 = ssub.s32 %s36, %s43
      %p351 = scmp.eq.s32.totalorder %s350, 0
      %s353 = sadd.s32 %s352, 1
      %s354 = scalar_select %p351, %s352, %s353
      %p357 = pneg %p351
      %p358 = scmp.eq.s32.totalorder %s28, 1
      %p359 = por %p357, %p358
      %p360 = scmp.ne.s32.totalorder %s352, %s355
      %p361 = scmp.eq.s32.totalorder %s28, 0
      %p362 = por %p360, %p361
      %p363 = scmp.ne.s32.totalorder %s352, %s355
      %p364 = scmp.eq.s32.totalorder %s33, 1
      %p365 = por %p363, %p364
      %p366 = scmp.ne.s32.totalorder %s355, %s356
      %p367 = scmp.eq.s32.totalorder %s33, 0
      %p368 = por %p366, %p367
      %p369 = scmp.ne.s32.totalorder %s355, %s356
      %p370 = scmp.eq.s32.totalorder %s34, 1
      %p371 = por %p369, %p370
      %p373 = scmp.ne.s32.totalorder %s356, %s372
      %p374 = scmp.eq.s32.totalorder %s34, 0
      %p375 = por %p373, %p374
      %s376 = ssub.s32 %s36, %s43
      %p377 = scmp.eq.s32.totalorder %s376, 0
      %s379 = sadd.s32 %s378, 1
      %s380 = scalar_select %p377, %s378, %s379
      %p383 = pneg %p377
      %p384 = scmp.eq.s32.totalorder %s28, 1
      %p385 = por %p383, %p384
      %p386 = scmp.ne.s32.totalorder %s378, %s381
      %p387 = scmp.eq.s32.totalorder %s28, 0
      %p388 = por %p386, %p387
      %p389 = scmp.ne.s32.totalorder %s378, %s381
      %p390 = scmp.eq.s32.totalorder %s33, 1
      %p391 = por %p389, %p390
      %p392 = scmp.ne.s32.totalorder %s381, %s382
      %p393 = scmp.eq.s32.totalorder %s33, 0
      %p394 = por %p392, %p393
      %p395 = scmp.ne.s32.totalorder %s381, %s382
      %p396 = scmp.eq.s32.totalorder %s34, 1
      %p397 = por %p395, %p396
      %p399 = scmp.ne.s32.totalorder %s382, %s398
      %p400 = scmp.eq.s32.totalorder %s34, 0
      %p401 = por %p399, %p400
      %s402 = ssub.s32 %s36, %s43
      %p403 = scmp.eq.s32.totalorder %s402, 0
      %s405 = sadd.s32 %s404, 1
      %s406 = scalar_select %p403, %s404, %s405
      %p409 = pneg %p403
      %p410 = scmp.eq.s32.totalorder %s28, 1
      %p411 = por %p409, %p410
      %p412 = scmp.ne.s32.totalorder %s404, %s407
      %p413 = scmp.eq.s32.totalorder %s28, 0
      %p414 = por %p412, %p413
      %p415 = scmp.ne.s32.totalorder %s404, %s407
      %p416 = scmp.eq.s32.totalorder %s33, 1
      %p417 = por %p415, %p416
      %p418 = scmp.ne.s32.totalorder %s407, %s408
      %p419 = scmp.eq.s32.totalorder %s33, 0
      %p420 = por %p418, %p419
      %p421 = scmp.ne.s32.totalorder %s407, %s408
      %p422 = scmp.eq.s32.totalorder %s34, 1
      %p423 = por %p421, %p422
      %p425 = scmp.ne.s32.totalorder %s408, %s424
      %p426 = scmp.eq.s32.totalorder %s34, 0
      %p427 = por %p425, %p426
      %s428 = ssub.s32 %s36, %s43
      %p429 = scmp.eq.s32.totalorder %s428, 0
      %s431 = sadd.s32 %s430, 1
      %s432 = scalar_select %p429, %s430, %s431
      %p435 = pneg %p429
      %p436 = scmp.eq.s32.totalorder %s28, 1
      %p437 = por %p435, %p436
      %p438 = scmp.ne.s32.totalorder %s430, %s433
      %p439 = scmp.eq.s32.totalorder %s28, 0
      %p440 = por %p438, %p439
      %p441 = scmp.ne.s32.totalorder %s430, %s433
      %p442 = scmp.eq.s32.totalorder %s33, 1
      %p443 = por %p441, %p442
      %p444 = scmp.ne.s32.totalorder %s433, %s434
      %p445 = scmp.eq.s32.totalorder %s33, 0
      %p446 = por %p444, %p445
      %p447 = scmp.ne.s32.totalorder %s433, %s434
      %p448 = scmp.eq.s32.totalorder %s34, 1
      %p449 = por %p447, %p448
      %p451 = scmp.ne.s32.totalorder %s434, %s450
      %p452 = scmp.eq.s32.totalorder %s34, 0
      %p453 = por %p451, %p452
      %s454 = ssub.s32 %s35, %s47
      %p455 = scmp.eq.s32.totalorder %s454, 0
      %s457 = sadd.s32 %s456, 1
      %s458 = scalar_select %p455, %s456, %s457
      %p461 = pneg %p455
      %p462 = scmp.eq.s32.totalorder %s28, 1
      %p463 = por %p461, %p462
      %p464 = scmp.ne.s32.totalorder %s456, %s459
      %p465 = scmp.eq.s32.totalorder %s28, 0
      %p466 = por %p464, %p465
      %p467 = scmp.ne.s32.totalorder %s456, %s459
      %p468 = scmp.eq.s32.totalorder %s33, 1
      %p469 = por %p467, %p468
      %p470 = scmp.ne.s32.totalorder %s459, %s460
      %p471 = scmp.eq.s32.totalorder %s33, 0
      %p472 = por %p470, %p471
      %p473 = scmp.ne.s32.totalorder %s459, %s460
      %p474 = scmp.eq.s32.totalorder %s34, 1
      %p475 = por %p473, %p474
      %p477 = scmp.ne.s32.totalorder %s460, %s476
      %p478 = scmp.eq.s32.totalorder %s34, 0
      %p479 = por %p477, %p478
      %p480 = scmp.le.s32.totalorder 1, %s28
      %p481 = scmp.lt.s32.totalorder %s28, 3
      %p482 = pnand %p480, %p481
      %p483 = pneg %p482
      // Predicated region
      $region9: #{tpu_custom_call.1} parent=5 // pred_check
        _
      $region10: #{tpu_custom_call.1} parent=5 // pred_check_branch
        %485 = sbr.rel (%p482) target = $region12
      $region11: #{tpu_custom_call.1} parent=5 // pred_region
        %s486 = ssub.s32 %s28, 1
        // Predicated region
        $region13: #{tpu_custom_call.1} parent=11 // pred_check
          %p487 = pneg %p66
        $region14: #{tpu_custom_call.1} parent=11 // pred_check_branch
          %489 = sbr.rel (%p487) target = $region16
        $region15: #{tpu_custom_call.1} parent=11 // pred_region
          %s490 = smul.u32 2, %s37
          %492 = vsyncadd [#allocation4], 0
          %s493 = smul.addr %s490, 4
          %s494 = scalar_lea.hbm %s0, %s493
          %s495 = sshll.u32 %s494, 4
          %s496 = int_to_ptr.hbm [resolvable:$true] %s495
          %s497 = sshll.u32 [#allocation3], 4
          %s498 = int_to_ptr.vmem [resolvable:$true] %s497
          %503 = dma.hbm_to_vmem [thread:$0]  %s496, 128, %s498, [#allocation4], 64, 64, 4
        $region16: #{tpu_custom_call.1} parent=11 // pred_fallthru
          _
        // Predicated region
        $region17: #{tpu_custom_call.1} parent=11 // pred_check
          %p504 = pneg %p92
        $region18: #{tpu_custom_call.1} parent=11 // pred_check_branch
          %506 = sbr.rel (%p504) target = $region20
        $region19: #{tpu_custom_call.1} parent=11 // pred_region
          %s507 = smul.u32 2, %s37
          %509 = vsyncadd [#allocation7], 0
          %s510 = scalar_lea.hbm %s1, %s507
          %s511 = sshll.u32 %s510, 4
          %s512 = int_to_ptr.hbm [resolvable:$true] %s511
          %s513 = sshll.u32 [#allocation6], 4
          %s514 = int_to_ptr.vmem [resolvable:$true] %s513
          %519 = dma.hbm_to_vmem [thread:$0]  %s512, 32, %s514, [#allocation7], 16, 16, 1
        $region20: #{tpu_custom_call.1} parent=11 // pred_fallthru
          _
        // Predicated region
        $region21: #{tpu_custom_call.1} parent=11 // pred_check
          %p520 = pneg %p113
        $region22: #{tpu_custom_call.1} parent=11 // pred_check_branch
          %522 = sbr.rel (%p520) target = $region24
        $region23: #{tpu_custom_call.1} parent=11 // pred_region
          _
        $region24: #{tpu_custom_call.1} parent=11 // pred_fallthru
          _
        // Predicated region
        $region25: #{tpu_custom_call.1} parent=11 // pred_check
          %p523 = pneg %p134
        $region26: #{tpu_custom_call.1} parent=11 // pred_check_branch
          %525 = sbr.rel (%p523) target = $region28
        $region27: #{tpu_custom_call.1} parent=11 // pred_region
          %527 = vsyncadd [#allocation7], 0
          %s529 = sshll.u32 %s3, 4
          %s530 = int_to_ptr.hbm [resolvable:$true] %s529
          %s531 = sshll.u32 [#allocation8], 4
          %s532 = int_to_ptr.vmem [resolvable:$true] %s531
          %534 = dma.hbm_to_vmem [thread:$0]  %s530, 16, %s532, [#allocation7]
        $region28: #{tpu_custom_call.1} parent=11 // pred_fallthru
          _
      $region12: #{tpu_custom_call.1} parent=5 // pred_fallthru
        _
      %p535 = scmp.lt.s32.totalorder %s28, 2
      // Predicated region
      $region29: #{tpu_custom_call.1} parent=5 // pred_check
        %p536 = pneg %p535
      $region30: #{tpu_custom_call.1} parent=5 // pred_check_branch
        %538 = sbr.rel (%p536) target = $region32
      $region31: #{tpu_custom_call.1} parent=5 // pred_region
        // Predicated region
        $region33: #{tpu_custom_call.1} parent=31 // pred_check
          %p539 = pneg %p154
        $region34: #{tpu_custom_call.1} parent=31 // pred_check_branch
          %541 = sbr.rel (%p539) target = $region36
        $region35: #{tpu_custom_call.1} parent=31 // pred_region
          %p542 = scmp.lt.s32.totalorder %s36, 1
          %s543 = scalar_select %p542, %s36, 1
          %s544 = smul.addr %s543, 4
          %s545 = smul.addr %s544, 4
          %s546 = scalar_lea.vmem %s4, %s545
        $region36: #{tpu_custom_call.1} parent=31 // pred_fallthru
          _
        // Predicated region
        $region37: #{tpu_custom_call.1} parent=31 // pred_check
          %p547 = pneg %p180
        $region38: #{tpu_custom_call.1} parent=31 // pred_check_branch
          %549 = sbr.rel (%p547) target = $region40
        $region39: #{tpu_custom_call.1} parent=31 // pred_region
          %p550 = scmp.lt.s32.totalorder %s36, 1
          %s551 = scalar_select %p550, %s36, 1
          %s552 = scalar_lea.vmem %s5, %s551
        $region40: #{tpu_custom_call.1} parent=31 // pred_fallthru
          _
        // Predicated region
        $region41: #{tpu_custom_call.1} parent=31 // pred_check
          %p553 = pneg %p206
        $region42: #{tpu_custom_call.1} parent=31 // pred_check_branch
          %555 = sbr.rel (%p553) target = $region44
        $region43: #{tpu_custom_call.1} parent=31 // pred_region
          %p556 = scmp.lt.s32.totalorder %s36, 1
          %s557 = scalar_select %p556, %s36, 1
          %s558 = smul.addr %s557, 4
          %s559 = smul.addr %s558, 4
          %s560 = scalar_lea.vmem %s6, %s559
        $region44: #{tpu_custom_call.1} parent=31 // pred_fallthru
          _
        // Predicated region
        $region45: #{tpu_custom_call.1} parent=31 // pred_check
          %p561 = pneg %p232
        $region46: #{tpu_custom_call.1} parent=31 // pred_check_branch
          %563 = sbr.rel (%p561) target = $region48
        $region47: #{tpu_custom_call.1} parent=31 // pred_region
          %p564 = scmp.lt.s32.totalorder %s36, 1
          %s565 = scalar_select %p564, %s36, 1
          %s566 = scalar_lea.vmem %s7, %s565
        $region48: #{tpu_custom_call.1} parent=31 // pred_fallthru
          _
        // Predicated region
        $region49: #{tpu_custom_call.1} parent=31 // pred_check
          %p567 = pneg %p258
        $region50: #{tpu_custom_call.1} parent=31 // pred_check_branch
          %569 = sbr.rel (%p567) target = $region52
        $region51: #{tpu_custom_call.1} parent=31 // pred_region
          %p570 = scmp.lt.s32.totalorder %s36, 1
          %s571 = scalar_select %p570, %s36, 1
          %s572 = scalar_lea.vmem %s8, %s571
        $region52: #{tpu_custom_call.1} parent=31 // pred_fallthru
          _
        // Predicated region
        $region53: #{tpu_custom_call.1} parent=31 // pred_check
          %p573 = pneg %p284
        $region54: #{tpu_custom_call.1} parent=31 // pred_check_branch
          %575 = sbr.rel (%p573) target = $region56
        $region55: #{tpu_custom_call.1} parent=31 // pred_region
          %s576 = sand.u32 %s28, 1
          %s577 = scalar_lea.sflag [#allocation10], %s576
          %s578 = sand.u32 %s274, 1
          %s579 = scalar_lea.vmem [#allocation9], %s578
          %581 = vsyncadd %s577, 0
          %s582 = scalar_lea.hbm %s9, %s36
          %s584 = sshll.u32 %s582, 4
          %s585 = int_to_ptr.hbm [resolvable:$true] %s584
          %s586 = sshll.u32 %s579, 4
          %s587 = int_to_ptr.vmem [resolvable:$true] %s586
          %589 = dma.hbm_to_vmem [thread:$0]  %s585, 16, %s587, %s577
        $region56: #{tpu_custom_call.1} parent=31 // pred_fallthru
          _
        // Predicated region
        $region57: #{tpu_custom_call.1} parent=31 // pred_check
          %p590 = pneg %p310
        $region58: #{tpu_custom_call.1} parent=31 // pred_check_branch
          %592 = sbr.rel (%p590) target = $region60
        $region59: #{tpu_custom_call.1} parent=31 // pred_region
          %p593 = scmp.lt.s32.totalorder %s36, 1
          %s594 = scalar_select %p593, %s36, 1
          %s595 = smul.addr %s594, 4
          %s596 = smul.addr %s595, 4
          %s597 = scalar_lea.vmem %s10, %s596
        $region60: #{tpu_custom_call.1} parent=31 // pred_fallthru
          _
        // Predicated region
        $region61: #{tpu_custom_call.1} parent=31 // pred_check
          %p598 = pneg %p336
        $region62: #{tpu_custom_call.1} parent=31 // pred_check_branch
          %600 = sbr.rel (%p598) target = $region64
        $region63: #{tpu_custom_call.1} parent=31 // pred_region
          %p601 = scmp.lt.s32.totalorder %s36, 1
          %s602 = scalar_select %p601, %s36, 1
          %s603 = scalar_lea.vmem %s11, %s602
        $region64: #{tpu_custom_call.1} parent=31 // pred_fallthru
          _
        // Predicated region
        $region65: #{tpu_custom_call.1} parent=31 // pred_check
          %p604 = pneg %p362
        $region66: #{tpu_custom_call.1} parent=31 // pred_check_branch
          %606 = sbr.rel (%p604) target = $region68
        $region67: #{tpu_custom_call.1} parent=31 // pred_region
          %p607 = scmp.lt.s32.totalorder %s36, 1
          %s608 = scalar_select %p607, %s36, 1
          %s609 = smul.addr %s608, 8
          %s610 = smul.addr %s609, 4
          %s611 = scalar_lea.vmem %s12, %s610
        $region68: #{tpu_custom_call.1} parent=31 // pred_fallthru
          _
        // Predicated region
        $region69: #{tpu_custom_call.1} parent=31 // pred_check
          %p612 = pneg %p388
        $region70: #{tpu_custom_call.1} parent=31 // pred_check_branch
          %614 = sbr.rel (%p612) target = $region72
        $region71: #{tpu_custom_call.1} parent=31 // pred_region
          %p615 = scmp.lt.s32.totalorder %s36, 1
          %s616 = scalar_select %p615, %s36, 1
          %s617 = scalar_lea.vmem %s13, %s616
        $region72: #{tpu_custom_call.1} parent=31 // pred_fallthru
          _
        // Predicated region
        $region73: #{tpu_custom_call.1} parent=31 // pred_check
          %p618 = pneg %p414
        $region74: #{tpu_custom_call.1} parent=31 // pred_check_branch
          %620 = sbr.rel (%p618) target = $region76
        $region75: #{tpu_custom_call.1} parent=31 // pred_region
          %p621 = scmp.lt.s32.totalorder %s36, 1
          %s622 = scalar_select %p621, %s36, 1
          %s623 = scalar_lea.vmem %s14, %s622
        $region76: #{tpu_custom_call.1} parent=31 // pred_fallthru
          _
        // Predicated region
        $region77: #{tpu_custom_call.1} parent=31 // pred_check
          %p624 = pneg %p440
        $region78: #{tpu_custom_call.1} parent=31 // pred_check_branch
          %626 = sbr.rel (%p624) target = $region80
        $region79: #{tpu_custom_call.1} parent=31 // pred_region
          %s627 = sand.u32 %s28, 1
          %s628 = scalar_lea.sflag [#allocation10], %s627
          %s629 = sand.u32 %s430, 1
          %s630 = scalar_lea.vmem [#allocation11], %s629
          %632 = vsyncadd %s628, 0
          %s633 = scalar_lea.hbm %s15, %s36
          %s635 = sshll.u32 %s633, 4
          %s636 = int_to_ptr.hbm [resolvable:$true] %s635
          %s637 = sshll.u32 %s630, 4
          %s638 = int_to_ptr.vmem [resolvable:$true] %s637
          %640 = dma.hbm_to_vmem [thread:$0]  %s636, 16, %s638, %s628
        $region80: #{tpu_custom_call.1} parent=31 // pred_fallthru
          _
      $region32: #{tpu_custom_call.1} parent=5 // pred_fallthru
        _
      %p641 = scmp.le.s32.totalorder 1, %s28
      %p642 = scmp.lt.s32.totalorder %s28, 3
      %p643 = pnand %p641, %p642
      %p644 = pneg %p643
      // Predicated region
      $region81: #{tpu_custom_call.1} parent=5 // pred_check
        _
      $region82: #{tpu_custom_call.1} parent=5 // pred_check_branch
        %646 = sbr.rel (%p643) target = $region84
      $region83: #{tpu_custom_call.1} parent=5 // pred_region
        %s647 = ssub.s32 %s28, 1
        // Predicated region
        $region85: #{tpu_custom_call.1} parent=83 // pred_check
          %p648 = pneg %p66
        $region86: #{tpu_custom_call.1} parent=83 // pred_check_branch
          %650 = sbr.rel (%p648) target = $region88
        $region87: #{tpu_custom_call.1} parent=83 // pred_region
          %652 = dma.done [#allocation4], 128
        $region88: #{tpu_custom_call.1} parent=83 // pred_fallthru
          _
        // Predicated region
        $region89: #{tpu_custom_call.1} parent=83 // pred_check
          %p653 = pneg %p92
        $region90: #{tpu_custom_call.1} parent=83 // pred_check_branch
          %655 = sbr.rel (%p653) target = $region92
        $region91: #{tpu_custom_call.1} parent=83 // pred_region
          %657 = dma.done [#allocation7], 32
        $region92: #{tpu_custom_call.1} parent=83 // pred_fallthru
          _
        // Predicated region
        $region93: #{tpu_custom_call.1} parent=83 // pred_check
          %p658 = pneg %p134
        $region94: #{tpu_custom_call.1} parent=83 // pred_check_branch
          %660 = sbr.rel (%p658) target = $region96
        $region95: #{tpu_custom_call.1} parent=83 // pred_region
          %662 = dma.done [#allocation7], 16
        $region96: #{tpu_custom_call.1} parent=83 // pred_fallthru
          _
        %s663 = sand.u32 %s33, 1
        %s664 = scalar_lea.sflag [#allocation10], %s663
        %s665 = sand.u32 %s277, 1
        %s666 = scalar_lea.vmem [#allocation9], %s665
        // Predicated region
        $region97: #{tpu_custom_call.1} parent=83 // pred_check
          %p667 = pneg %p290
        $region98: #{tpu_custom_call.1} parent=83 // pred_check_branch
          %669 = sbr.rel (%p667) target = $region100
        $region99: #{tpu_custom_call.1} parent=83 // pred_region
          %671 = dma.done %s664, 16
        $region100: #{tpu_custom_call.1} parent=83 // pred_fallthru
          _
        %s672 = sand.u32 %s33, 1
        %s673 = scalar_lea.sflag [#allocation10], %s672
        %s674 = sand.u32 %s433, 1
        %s675 = scalar_lea.vmem [#allocation11], %s674
        // Predicated region
        $region101: #{tpu_custom_call.1} parent=83 // pred_check
          %p676 = pneg %p446
        $region102: #{tpu_custom_call.1} parent=83 // pred_check_branch
          %678 = sbr.rel (%p676) target = $region104
        $region103: #{tpu_custom_call.1} parent=83 // pred_region
          %680 = dma.done %s673, 16
        $region104: #{tpu_custom_call.1} parent=83 // pred_fallthru
          _
        %p681 = pneg %p66
        %p682 = pneg %p63
        %p683 = pneg %p92
        %p684 = pneg %p89
        %p685 = pneg %p113
        %p686 = pneg %p110
        %p687 = pneg %p134
        %p688 = pneg %p131
        %p689 = scmp.lt.s32.totalorder %s38, 1
        %s690 = scalar_select %p689, %s38, 1
        %s691 = smul.addr %s690, 4
        %s692 = smul.addr %s691, 4
        %s693 = scalar_lea.vmem %s4, %s692
        %p694 = pneg %p160
        %p695 = pneg %p157
        %p696 = scmp.lt.s32.totalorder %s38, 1
        %s697 = scalar_select %p696, %s38, 1
        %s698 = scalar_lea.vmem %s5, %s697
        %p699 = pneg %p186
        %p700 = pneg %p183
        %p701 = scmp.lt.s32.totalorder %s38, 1
        %s702 = scalar_select %p701, %s38, 1
        %s703 = smul.addr %s702, 4
        %s704 = smul.addr %s703, 4
        %s705 = scalar_lea.vmem %s6, %s704
        %p706 = pneg %p212
        %p707 = pneg %p209
        %p708 = scmp.lt.s32.totalorder %s38, 1
        %s709 = scalar_select %p708, %s38, 1
        %s710 = scalar_lea.vmem %s7, %s709
        %p711 = pneg %p238
        %p712 = pneg %p235
        %p713 = scmp.lt.s32.totalorder %s38, 1
        %s714 = scalar_select %p713, %s38, 1
        %s715 = scalar_lea.vmem %s8, %s714
        %p716 = pneg %p264
        %p717 = pneg %p261
        %s718 = sand.u32 %s33, 1
        %s719 = scalar_lea.sflag [#allocation10], %s718
        %s720 = sand.u32 %s277, 1
        %s721 = scalar_lea.vmem [#allocation9], %s720
        %p722 = pneg %p290
        %p723 = pneg %p287
        %p724 = scmp.lt.s32.totalorder %s38, 1
        %s725 = scalar_select %p724, %s38, 1
        %s726 = smul.addr %s725, 4
        %s727 = smul.addr %s726, 4
        %s728 = scalar_lea.vmem %s10, %s727
        %p729 = pneg %p316
        %p730 = pneg %p313
        %p731 = scmp.lt.s32.totalorder %s38, 1
        %s732 = scalar_select %p731, %s38, 1
        %s733 = scalar_lea.vmem %s11, %s732
        %p734 = pneg %p342
        %p735 = pneg %p339
        %p736 = scmp.lt.s32.totalorder %s38, 1
        %s737 = scalar_select %p736, %s38, 1
        %s738 = smul.addr %s737, 8
        %s739 = smul.addr %s738, 4
        %s740 = scalar_lea.vmem %s12, %s739
        %p741 = pneg %p368
        %p742 = pneg %p365
        %p743 = scmp.lt.s32.totalorder %s38, 1
        %s744 = scalar_select %p743, %s38, 1
        %s745 = scalar_lea.vmem %s13, %s744
        %p746 = pneg %p394
        %p747 = pneg %p391
        %p748 = scmp.lt.s32.totalorder %s38, 1
        %s749 = scalar_select %p748, %s38, 1
        %s750 = scalar_lea.vmem %s14, %s749
        %p751 = pneg %p420
        %p752 = pneg %p417
        %s753 = sand.u32 %s33, 1
        %s754 = scalar_lea.sflag [#allocation10], %s753
        %s755 = sand.u32 %s433, 1
        %s756 = scalar_lea.vmem [#allocation11], %s755
        %p757 = pneg %p446
        %p758 = pneg %p443
        %p759 = pneg %p472
        %p760 = pneg %p469
        %s761 = smul.u32 2, %s37
        %s762 = smul.u32 2, %s37
        %p763 = scmp.lt.s32.totalorder %s38, 1
        %s764 = scalar_select %p763, %s38, 1
        %s765 = smul.addr %s764, 4
        %s766 = smul.addr %s765, 4
        %s767 = scalar_lea.vmem %s4, %s766
        %p768 = scmp.lt.s32.totalorder %s38, 1
        %s769 = scalar_select %p768, %s38, 1
        %s770 = scalar_lea.vmem %s5, %s769
        %p771 = scmp.lt.s32.totalorder %s38, 1
        %s772 = scalar_select %p771, %s38, 1
        %s773 = smul.addr %s772, 4
        %s774 = smul.addr %s773, 4
        %s775 = scalar_lea.vmem %s6, %s774
        %p776 = scmp.lt.s32.totalorder %s38, 1
        %s777 = scalar_select %p776, %s38, 1
        %s778 = scalar_lea.vmem %s7, %s777
        %p779 = scmp.lt.s32.totalorder %s38, 1
        %s780 = scalar_select %p779, %s38, 1
        %s781 = scalar_lea.vmem %s8, %s780
        %p782 = scmp.lt.s32.totalorder %s38, 1
        %s783 = scalar_select %p782, %s38, 1
        %s784 = smul.addr %s783, 4
        %s785 = smul.addr %s784, 4
        %s786 = scalar_lea.vmem %s10, %s785
        %p787 = scmp.lt.s32.totalorder %s38, 1
        %s788 = scalar_select %p787, %s38, 1
        %s789 = scalar_lea.vmem %s11, %s788
        %p790 = scmp.lt.s32.totalorder %s38, 1
        %s791 = scalar_select %p790, %s38, 1
        %s792 = smul.addr %s791, 8
        %s793 = smul.addr %s792, 4
        %s794 = scalar_lea.vmem %s12, %s793
        %p795 = scmp.lt.s32.totalorder %s38, 1
        %s796 = scalar_select %p795, %s38, 1
        %s797 = scalar_lea.vmem %s13, %s796
        %p798 = scmp.lt.s32.totalorder %s38, 1
        %s799 = scalar_select %p798, %s38, 1
        %s800 = scalar_lea.vmem %s14, %s799
        %p802 = scmp.eq.s32.totalorder %s38, 0
        // Predicated region
        $region105: #{tpu_custom_call.1} parent=83 // pred_check
          %p803 = pneg %p802
        $region106: #{tpu_custom_call.1} parent=83 // pred_check_branch
          %805 = sbr.rel (%p803) target = $region108
        $region107: #{tpu_custom_call.1} parent=83 // pred_region
          %v806 = vld [vmem:[#allocation3] sm:$0xf]
          %v807 = vld [vmem:[#allocation3 + $0x4] sm:$0xf]
          %v808 = vunpack.c.l.bf16 %v806
          %v809 = vunpack.c.l.bf16 %v807
          %v810 = vld [vmem:[%s2] sm:$0x1]
          %v811 = vld [vmem:[#allocation8] sm:$0x1]
          %vm812 = vcmask 261120
          %v813 = vsel %vm812, %v808, 0.0
          %814 = vadd.xlane.f32.xlu0 %v813
          %v815 = vpop.xlane.xlu0 %814
          %v816 = vsel %vm812, %v809, 0.0
          %817 = vadd.xlane.f32.xlu0 %v816
          %v818 = vpop.xlane.xlu0 %817
          %v819 = vrcp.pop 32.0
          %v820 = vmul.f32 32.0, %v819
          %v821 = vsub.f32 1.0, %v820
          %v822 = vmul.f32 %v819, %v821
          %v823 = vadd.f32 %v819, %v822
          %vm824 = vweird.f32 %v819
          %v825 = vsel %vm824, %v819, %v823
          %v826 = vmul.f32 %v815, %v825
          %v827 = vmul.f32 %v818, %v825
          %v828 = vsub.f32 %v808, %v826
          %v829 = vsub.f32 %v809, %v827
          %v830 = vmul.f32 %v828, %v828
          %v831 = vmul.f32 %v829, %v829
          %v832 = vsel %vm812, %v830, 0.0
          %833 = vadd.xlane.f32.xlu0 %v832
          %v834 = vpop.xlane.xlu0 %833
          %v835 = vsel %vm812, %v831, 0.0
          %836 = vadd.xlane.f32.xlu0 %v835
          %v837 = vpop.xlane.xlu0 %836
          %v838 = vmul.f32 %v834, %v825
          %v839 = vmul.f32 %v837, %v825
          %v840 = vadd.f32 %v838, 1e-12
          %v841 = vadd.f32 %v839, 1e-12
          %v842 = vrsqrt.pop %v840
          %v843 = vmul.f32 %v842, %v840
          %v844 = vmul.f32 %v843, %v842
          %v845 = vmul.f32 0.5, %v844
          %v846 = vsub.f32 1.5, %v845
          %v847 = vmul.f32 %v842, %v846
          %vm848 = vweird.f32 %v840
          %vm849 = vweird.f32 %v842
          %vm850 = vmor %vm848, %vm849
          %v851 = vsel %vm850, %v842, %v847
          %v852 = vrsqrt.pop %v841
          %v853 = vmul.f32 %v852, %v841
          %v854 = vmul.f32 %v853, %v852
          %v855 = vmul.f32 0.5, %v854
          %v856 = vsub.f32 1.5, %v855
          %v857 = vmul.f32 %v852, %v856
          %vm858 = vweird.f32 %v841
          %vm859 = vweird.f32 %v852
          %vm860 = vmor %vm858, %vm859
          %v861 = vsel %vm860, %v852, %v857
          %v862 = vmul.f32 %v828, %v851
          %v863 = vmul.f32 %v829, %v861
          %v865 = vperm.slane %v810, 0
          %v867 = vmul.f32 %v862, %v865
          %v868 = vmul.f32 %v863, %v865
          %v870 = vperm.slane %v811, 0
          %v872 = vadd.f32 %v867, %v870
          %v873 = vadd.f32 %v868, %v870
          %874 = vst.msk [vmem:[#allocation2] sm:$0xff] %vm812, %v872
          %875 = vst.msk [vmem:[#allocation2 + $0x8] sm:$0xff] %vm812, %v873
        $region108: #{tpu_custom_call.1} parent=83 // pred_fallthru
          _
        %v876 = vld [vmem:[#allocation2] sm:$0xff]
        %v877 = vld [vmem:[#allocation2 + $0x8] sm:$0xff]
        %v878 = vpack.c.bf16 %v877, %v876
        %v879 = vld [vmem:[%s767] sm:$0xf]
        %v880 = vld [vmem:[%s767 + $0x4] sm:$0xf]
        %v881 = vld [vmem:[%s767 + $0x8] sm:$0xf]
        %v882 = vld [vmem:[%s767 + $0xc] sm:$0xf]
        %v887 = vunpack.c.l.b16 %v879
        %v888 = vunpack.c.l.b16 %v880
        %v889 = vunpack.c.l.b16 %v881
        %v890 = vunpack.c.l.b16 %v882
        %v891 = vpack.c.b16 %v888, %v887
        %v892 = vpack.c.b16 %v890, %v889
        %vm895 = vcmask 261120
        %v897 = vsel %vm895, %v878, 0
        %899 = vmatpush.bf16.msra.mxu0 0
        %900 = vmatpush.bf16.msra.mxu0 0
        %901 = vmatpush.bf16.msra.mxu0 0
        %902 = vmatpush.bf16.msra.mxu0 0
        %903 = vmatpush.bf16.msra.mxu0 0
        %904 = vmatpush.bf16.msra.mxu0 0
        %905 = vmatpush.bf16.msra.mxu0 %v892
        %906 = vmatpush.bf16.msra.mxu0 %v891
        %907 = vmatmul.bf16.gmra.mxu0 %v897
        %v908 = vpop.f32.mrf.mxu0
        %v909 = vadd.f32 0.0, %v908
        %v910 = vpop.f32.mrf.mxu0
        %v911 = vadd.f32 0.0, %v910
        %912 = vdwg.mxu0
        %v913 = vld [vmem:[%s770] sm:$0x1]
        %v915 = vperm.slane %v913, 0
        %v917 = vadd.f32 %v909, %v915
        %v918 = vadd.f32 %v911, %v915
        %v919 = vpack.c.bf16 %v917, %v917
        %v920 = vpack.c.bf16 %v918, %v918
        %v921 = vld [vmem:[#allocation6] sm:$0x1]
        %v922 = vld [vmem:[#allocation6 + $0x1] sm:$0x1]
        %v925 = vperm.slane %v921, 0
        %v926 = vperm.slane %v922, 0
        %v930 = vunpack.c.l.b16 %v919
        %v931 = vpack.c.b16 %v930, %v930
        %932 = vrot.lane.b32.xlu0 %v931, 96
        %v933 = vpop.permute.xlu0 %932
        %vm934 = vcmask 130048
        %v936 = vsel %vm934, %v919, 0
        %v939 = vsel %vm934, %v933, 0
        %941 = vmatpush.bf16.xpose.msra.mxu0 0
        %942 = vmatpush.bf16.xpose.msra.mxu0 0
        %943 = vmatpush.bf16.xpose.msra.mxu0 0
        %944 = vmatpush.bf16.xpose.msra.mxu0 0
        %945 = vmatpush.bf16.xpose.msra.mxu0 0
        %946 = vmatpush.bf16.xpose.msra.mxu0 0
        %947 = vmatpush.bf16.xpose.msra.mxu0 0
        %948 = vmatpush.bf16.xpose.msra.mxu0 %v939
        %949 = vmatmul.bf16.gmra.mxu0 %v936
        %v950 = vpop.f32.mrf.mxu0
        %v951 = vadd.f32 %v925, %v950
        %v952 = vpop.f32.mrf.mxu0
        %953 = vdwg.mxu0
        %v955 = vunpack.c.l.b16 %v920
        %v956 = vpack.c.b16 %v955, %v955
        %957 = vrot.lane.b32.xlu0 %v956, 96
        %v958 = vpop.permute.xlu0 %957
        %v960 = vsel %vm934, %v920, 0
        %v963 = vsel %vm934, %v958, 0
        %965 = vmatpush.bf16.xpose.msra.mxu0 0
        %966 = vmatpush.bf16.xpose.msra.mxu0 0
        %967 = vmatpush.bf16.xpose.msra.mxu0 0
        %968 = vmatpush.bf16.xpose.msra.mxu0 0
        %969 = vmatpush.bf16.xpose.msra.mxu0 0
        %970 = vmatpush.bf16.xpose.msra.mxu0 0
        %971 = vmatpush.bf16.xpose.msra.mxu0 0
        %972 = vmatpush.bf16.xpose.msra.mxu0 %v963
        %973 = vmatmul.bf16.gmra.mxu0 %v960
        %v974 = vpop.f32.mrf.mxu0
        %v975 = vadd.f32 %v926, %v974
        %v976 = vpop.f32.mrf.mxu0
        %977 = vdwg.mxu0
        %vm978 = vcmask 64512
        %v979 = vsel %vm978, %v951, -inf
        %980 = vmax.xlane.f32.xlu0 %v979
        %v981 = vpop.xlane.xlu0 %980
        %v982 = vsel %vm978, %v975, -inf
        %983 = vmax.xlane.f32.xlu0 %v982
        %v984 = vpop.xlane.xlu0 %983
        %v985 = vsub.f32 %v951, %v981
        %v986 = vsub.f32 %v975, %v984
        %v987 = vmul.f32 %v985, 1.442695
        %v988 = vpow.pop %v987
        %v989 = vmul.f32 %v986, 1.442695
        %v990 = vpow.pop %v989
        %v991 = vsel %vm978, %v988, 0.0
        %992 = vadd.xlane.f32.xlu0 %v991
        %v993 = vpop.xlane.xlu0 %992
        %v994 = vsel %vm978, %v990, 0.0
        %995 = vadd.xlane.f32.xlu0 %v994
        %v996 = vpop.xlane.xlu0 %995
        %v997 = vrcp.pop %v993
        %v998 = vrcp.pop %v996
        %v999 = vmul.f32 %v988, %v997
        %v1000 = vmul.f32 %v990, %v998
        %v1001 = vpack.c.bf16 %v999, %v999
        %v1002 = vpack.c.bf16 %v1000, %v1000
        %1003 = vrot.lane.b32.xlu0 %v931, 64
        %v1004 = vpop.permute.xlu0 %1003
        %v1006 = vsel %vm978, %v1001, 0
        %vm1008 = vcmask 1043456
        %v1010 = vsel %vm1008, %v1004, 0
        %1012 = vmatpush.bf16.msra.mxu0 0
        %1013 = vmatpush.bf16.msra.mxu0 0
        %1014 = vmatpush.bf16.msra.mxu0 0
        %1015 = vmatpush.bf16.msra.mxu0 0
        %1016 = vmatpush.bf16.msra.mxu0 0
        %1017 = vmatpush.bf16.msra.mxu0 0
        %1018 = vmatpush.bf16.msra.mxu0 0
        %1019 = vmatpush.bf16.msra.mxu0 %v1010
        %1020 = vmatmul.bf16.gmra.mxu0 %v1006
        %v1021 = vpop.f32.mrf.mxu0
        %v1022 = vadd.f32 0.0, %v1021
        %v1023 = vpop.f32.mrf.mxu0
        %1024 = vdwg.mxu0
        %1025 = vrot.lane.b32.xlu0 %v956, 64
        %v1026 = vpop.permute.xlu0 %1025
        %v1028 = vsel %vm978, %v1002, 0
        %v1031 = vsel %vm1008, %v1026, 0
        %1033 = vmatpush.bf16.msra.mxu0 0
        %1034 = vmatpush.bf16.msra.mxu0 0
        %1035 = vmatpush.bf16.msra.mxu0 0
        %1036 = vmatpush.bf16.msra.mxu0 0
        %1037 = vmatpush.bf16.msra.mxu0 0
        %1038 = vmatpush.bf16.msra.mxu0 0
        %1039 = vmatpush.bf16.msra.mxu0 0
        %1040 = vmatpush.bf16.msra.mxu0 %v1031
        %1041 = vmatmul.bf16.gmra.mxu0 %v1028
        %v1042 = vpop.f32.mrf.mxu0
        %v1043 = vadd.f32 0.0, %v1042
        %v1044 = vpop.f32.mrf.mxu0
        %1045 = vdwg.mxu0
        %v1046 = vpack.c.bf16 %v1022, %v1022
        %v1047 = vpack.c.bf16 %v1043, %v1043
        %1048 = vrot.lane.b32.xlu0 %v931, 112
        %v1049 = vpop.permute.xlu0 %1048
        %1050 = vrot.lane.b32.xlu0 %v931, 80
        %v1051 = vpop.permute.xlu0 %1050
        %v1053 = vsel %vm934, %v1049, 0
        %v1056 = vsel %vm934, %v1051, 0
        %1058 = vmatpush.bf16.xpose.msra.mxu0 0
        %1059 = vmatpush.bf16.xpose.msra.mxu0 0
        %1060 = vmatpush.bf16.xpose.msra.mxu0 0
        %1061 = vmatpush.bf16.xpose.msra.mxu0 0
        %1062 = vmatpush.bf16.xpose.msra.mxu0 0
        %1063 = vmatpush.bf16.xpose.msra.mxu0 0
        %1064 = vmatpush.bf16.xpose.msra.mxu0 0
        %1065 = vmatpush.bf16.xpose.msra.mxu0 %v1056
        %1066 = vmatmul.bf16.gmra.mxu0 %v1053
        %v1067 = vpop.f32.mrf.mxu0
        %v1068 = vadd.f32 %v925, %v1067
        %v1069 = vpop.f32.mrf.mxu0
        %1070 = vdwg.mxu0
        %1071 = vrot.lane.b32.xlu0 %v956, 112
        %v1072 = vpop.permute.xlu0 %1071
        %1073 = vrot.lane.b32.xlu0 %v956, 80
        %v1074 = vpop.permute.xlu0 %1073
        %v1076 = vsel %vm934, %v1072, 0
        %v1079 = vsel %vm934, %v1074, 0
        %1081 = vmatpush.bf16.xpose.msra.mxu0 0
        %1082 = vmatpush.bf16.xpose.msra.mxu0 0
        %1083 = vmatpush.bf16.xpose.msra.mxu0 0
        %1084 = vmatpush.bf16.xpose.msra.mxu0 0
        %1085 = vmatpush.bf16.xpose.msra.mxu0 0
        %1086 = vmatpush.bf16.xpose.msra.mxu0 0
        %1087 = vmatpush.bf16.xpose.msra.mxu0 0
        %1088 = vmatpush.bf16.xpose.msra.mxu0 %v1079
        %1089 = vmatmul.bf16.gmra.mxu0 %v1076
        %v1090 = vpop.f32.mrf.mxu0
        %v1091 = vadd.f32 %v926, %v1090
        %v1092 = vpop.f32.mrf.mxu0
        %1093 = vdwg.mxu0
        %v1094 = vsel %vm978, %v1068, -inf
        %1095 = vmax.xlane.f32.xlu0 %v1094
        %v1096 = vpop.xlane.xlu0 %1095
        %v1097 = vsel %vm978, %v1091, -inf
        %1098 = vmax.xlane.f32.xlu0 %v1097
        %v1099 = vpop.xlane.xlu0 %1098
        %v1100 = vsub.f32 %v1068, %v1096
        %v1101 = vsub.f32 %v1091, %v1099
        %v1102 = vmul.f32 %v1100, 1.442695
        %v1103 = vpow.pop %v1102
        %v1104 = vmul.f32 %v1101, 1.442695
        %v1105 = vpow.pop %v1104
        %v1106 = vsel %vm978, %v1103, 0.0
        %1107 = vadd.xlane.f32.xlu0 %v1106
        %v1108 = vpop.xlane.xlu0 %1107
        %v1109 = vsel %vm978, %v1105, 0.0
        %1110 = vadd.xlane.f32.xlu0 %v1109
        %v1111 = vpop.xlane.xlu0 %1110
        %v1112 = vrcp.pop %v1108
        %v1113 = vrcp.pop %v1111
        %v1114 = vmul.f32 %v1103, %v1112
        %v1115 = vmul.f32 %v1105, %v1113
        %v1116 = vpack.c.bf16 %v1114, %v1114
        %v1117 = vpack.c.bf16 %v1115, %v1115
        %1118 = vrot.lane.b32.xlu0 %v931, 48
        %v1119 = vpop.permute.xlu0 %1118
        %v1121 = vsel %vm978, %v1116, 0
        %v1124 = vsel %vm1008, %v1119, 0
        %1126 = vmatpush.bf16.msra.mxu0 0
        %1127 = vmatpush.bf16.msra.mxu0 0
        %1128 = vmatpush.bf16.msra.mxu0 0
        %1129 = vmatpush.bf16.msra.mxu0 0
        %1130 = vmatpush.bf16.msra.mxu0 0
        %1131 = vmatpush.bf16.msra.mxu0 0
        %1132 = vmatpush.bf16.msra.mxu0 0
        %1133 = vmatpush.bf16.msra.mxu0 %v1124
        %1134 = vmatmul.bf16.gmra.mxu0 %v1121
        %v1135 = vpop.f32.mrf.mxu0
        %v1136 = vadd.f32 0.0, %v1135
        %v1137 = vpop.f32.mrf.mxu0
        %1138 = vdwg.mxu0
        %1139 = vrot.lane.b32.xlu0 %v956, 48
        %v1140 = vpop.permute.xlu0 %1139
        %v1142 = vsel %vm978, %v1117, 0
        %v1145 = vsel %vm1008, %v1140, 0
        %1147 = vmatpush.bf16.msra.mxu0 0
        %1148 = vmatpush.bf16.msra.mxu0 0
        %1149 = vmatpush.bf16.msra.mxu0 0
        %1150 = vmatpush.bf16.msra.mxu0 0
        %1151 = vmatpush.bf16.msra.mxu0 0
        %1152 = vmatpush.bf16.msra.mxu0 0
        %1153 = vmatpush.bf16.msra.mxu0 0
        %1154 = vmatpush.bf16.msra.mxu0 %v1145
        %1155 = vmatmul.bf16.gmra.mxu0 %v1142
        %v1156 = vpop.f32.mrf.mxu0
        %v1157 = vadd.f32 0.0, %v1156
        %v1158 = vpop.f32.mrf.mxu0
        %1159 = vdwg.mxu0
        %v1160 = vpack.c.bf16 %v1136, %v1136
        %v1161 = vpack.c.bf16 %v1157, %v1157
        %v1164 = vunpack.c.l.b16 %v1160
        %v1165 = vunpack.c.l.b16 %v1161
        %v1166 = vpack.c.b16 %v1164, %v1164
        %v1167 = vpack.c.b16 %v1165, %v1165
        %1168 = vrot.lane.b32.xlu0 %v1166, 16
        %v1169 = vpop.permute.xlu0 %1168
        %1170 = vrot.lane.b32.xlu0 %v1167, 16
        %v1171 = vpop.permute.xlu0 %1170
        %v1174 = vsel %vm934, %v1046, %v1169
        %v1177 = vsel %vm934, %v1047, %v1171
        %v1178 = vld [vmem:[%s775] sm:$0xf]
        %v1179 = vld [vmem:[%s775 + $0x4] sm:$0xf]
        %v1180 = vld [vmem:[%s775 + $0x8] sm:$0xf]
        %v1181 = vld [vmem:[%s775 + $0xc] sm:$0xf]
        %v1182 = vld [vmem:[%s778] sm:$0x1]
        %v1184 = vperm.slane %v1182, 0
        %v1188 = vunpack.c.l.b16 %v1174
        %v1189 = vunpack.c.l.b16 %v1177
        %v1190 = vpack.c.b16 %v1189, %v1188
        %v1195 = vunpack.c.l.b16 %v1178
        %v1196 = vunpack.c.l.b16 %v1179
        %v1197 = vunpack.c.l.b16 %v1180
        %v1198 = vunpack.c.l.b16 %v1181
        %v1199 = vpack.c.b16 %v1196, %v1195
        %v1200 = vpack.c.b16 %v1198, %v1197
        %v1204 = vsel %vm895, %v1190, 0
        %1206 = vmatpush.bf16.msra.mxu0 0
        %1207 = vmatpush.bf16.msra.mxu0 0
        %1208 = vmatpush.bf16.msra.mxu0 0
        %1209 = vmatpush.bf16.msra.mxu0 0
        %1210 = vmatpush.bf16.msra.mxu0 0
        %1211 = vmatpush.bf16.msra.mxu0 0
        %1212 = vmatpush.bf16.msra.mxu0 %v1200
        %1213 = vmatpush.bf16.msra.mxu0 %v1199
        %1214 = vmatmul.bf16.gmra.mxu0 %v1204
        %v1215 = vpop.f32.mrf.mxu0
        %v1216 = vadd.f32 %v1184, %v1215
        %v1217 = vpop.f32.mrf.mxu0
        %v1218 = vadd.f32 %v1184, %v1217
        %1219 = vdwg.mxu0
        %v1220 = vadd.f32 %v876, %v1216
        %v1221 = vadd.f32 %v877, %v1218
        %v1222 = vld [vmem:[%s781] sm:$0x1]
        %v1223 = vld [vmem:[%s666] sm:$0x1]
        %v1224 = vsel %vm895, %v1220, 0.0
        %1225 = vadd.xlane.f32.xlu0 %v1224
        %v1226 = vpop.xlane.xlu0 %1225
        %v1227 = vsel %vm895, %v1221, 0.0
        %1228 = vadd.xlane.f32.xlu0 %v1227
        %v1229 = vpop.xlane.xlu0 %1228
        %v1230 = vrcp.pop 32.0
        %v1231 = vmul.f32 32.0, %v1230
        %v1232 = vsub.f32 1.0, %v1231
        %v1233 = vmul.f32 %v1230, %v1232
        %v1234 = vadd.f32 %v1230, %v1233
        %vm1235 = vweird.f32 %v1230
        %v1236 = vsel %vm1235, %v1230, %v1234
        %v1237 = vmul.f32 %v1226, %v1236
        %v1238 = vmul.f32 %v1229, %v1236
        %v1239 = vsub.f32 %v1220, %v1237
        %v1240 = vsub.f32 %v1221, %v1238
        %v1241 = vmul.f32 %v1239, %v1239
        %v1242 = vmul.f32 %v1240, %v1240
        %v1243 = vsel %vm895, %v1241, 0.0
        %1244 = vadd.xlane.f32.xlu0 %v1243
        %v1245 = vpop.xlane.xlu0 %1244
        %v1246 = vsel %vm895, %v1242, 0.0
        %1247 = vadd.xlane.f32.xlu0 %v1246
        %v1248 = vpop.xlane.xlu0 %1247
        %v1249 = vmul.f32 %v1245, %v1236
        %v1250 = vmul.f32 %v1248, %v1236
        %v1251 = vadd.f32 %v1249, 1e-12
        %v1252 = vadd.f32 %v1250, 1e-12
        %v1253 = vrsqrt.pop %v1251
        %v1254 = vmul.f32 %v1253, %v1251
        %v1255 = vmul.f32 %v1254, %v1253
        %v1256 = vmul.f32 0.5, %v1255
        %v1257 = vsub.f32 1.5, %v1256
        %v1258 = vmul.f32 %v1253, %v1257
        %vm1259 = vweird.f32 %v1251
        %vm1260 = vweird.f32 %v1253
        %vm1261 = vmor %vm1259, %vm1260
        %v1262 = vsel %vm1261, %v1253, %v1258
        %v1263 = vrsqrt.pop %v1252
        %v1264 = vmul.f32 %v1263, %v1252
        %v1265 = vmul.f32 %v1264, %v1263
        %v1266 = vmul.f32 0.5, %v1265
        %v1267 = vsub.f32 1.5, %v1266
        %v1268 = vmul.f32 %v1263, %v1267
        %vm1269 = vweird.f32 %v1252
        %vm1270 = vweird.f32 %v1263
        %vm1271 = vmor %vm1269, %vm1270
        %v1272 = vsel %vm1271, %v1263, %v1268
        %v1273 = vmul.f32 %v1239, %v1262
        %v1274 = vmul.f32 %v1240, %v1272
        %v1276 = vperm.slane %v1222, 0
        %v1278 = vmul.f32 %v1273, %v1276
        %v1279 = vmul.f32 %v1274, %v1276
        %v1281 = vperm.slane %v1223, 0
        %v1283 = vadd.f32 %v1278, %v1281
        %v1284 = vadd.f32 %v1279, %v1281
        %v1285 = vpack.c.bf16 %v1284, %v1283
        %v1286 = vld [vmem:[%s786] sm:$0xf]
        %v1287 = vld [vmem:[%s786 + $0x4] sm:$0xf]
        %v1288 = vld [vmem:[%s786 + $0x8] sm:$0xf]
        %v1289 = vld [vmem:[%s786 + $0xc] sm:$0xf]
        %v1290 = vld [vmem:[%s789] sm:$0x1]
        %v1292 = vperm.slane %v1290, 0
        %v1298 = vunpack.c.l.b16 %v1286
        %v1299 = vunpack.c.l.b16 %v1287
        %v1300 = vunpack.c.l.b16 %v1288
        %v1301 = vunpack.c.l.b16 %v1289
        %v1302 = vpack.c.b16 %v1299, %v1298
        %v1303 = vpack.c.b16 %v1301, %v1300
        %v1307 = vsel %vm895, %v1285, 0
        %1309 = vmatpush.bf16.msra.mxu0 0
        %1310 = vmatpush.bf16.msra.mxu0 0
        %1311 = vmatpush.bf16.msra.mxu0 0
        %1312 = vmatpush.bf16.msra.mxu0 0
        %1313 = vmatpush.bf16.msra.mxu0 0
        %1314 = vmatpush.bf16.msra.mxu0 0
        %1315 = vmatpush.bf16.msra.mxu0 %v1303
        %1316 = vmatpush.bf16.msra.mxu0 %v1302
        %1317 = vmatmul.bf16.gmra.mxu0 %v1307
        %v1318 = vpop.f32.mrf.mxu0
        %v1319 = vadd.f32 %v1292, %v1318
        %v1320 = vpop.f32.mrf.mxu0
        %v1321 = vadd.f32 %v1292, %v1320
        %1322 = vdwg.mxu0
        %v1323 = vmul.f32 %v1319, 0.5
        %v1324 = vmul.f32 %v1321, 0.5
        %v1325 = vmul.f32 %v1319, 0.044715
        %v1326 = vmul.f32 %v1321, 0.044715
        %v1327 = vmul.f32 %v1325, %v1319
        %v1328 = vmul.f32 %v1326, %v1321
        %v1329 = vmul.f32 %v1327, %v1319
        %v1330 = vmul.f32 %v1328, %v1321
        %v1331 = vadd.f32 %v1319, %v1329
        %v1332 = vadd.f32 %v1321, %v1330
        %v1333 = vmul.f32 %v1331, 0.7978846
        %v1334 = vmul.f32 %v1332, 0.7978846
        %v1335 = vtanh.pop %v1333
        %v1336 = vtanh.pop %v1334
        %v1337 = vadd.f32 %v1335, 1.0
        %v1338 = vadd.f32 %v1336, 1.0
        %v1339 = vmul.f32 %v1323, %v1337
        %v1340 = vmul.f32 %v1324, %v1338
        %v1341 = vpack.c.bf16 %v1340, %v1339
        %v1342 = vld [vmem:[%s794] sm:$0xf]
        %v1343 = vld [vmem:[%s794 + $0x4] sm:$0xf]
        %v1344 = vld [vmem:[%s794 + $0x8] sm:$0xf]
        %v1345 = vld [vmem:[%s794 + $0xc] sm:$0xf]
        %v1346 = vld [vmem:[%s794 + $0x10] sm:$0xf]
        %v1347 = vld [vmem:[%s794 + $0x14] sm:$0xf]
        %v1348 = vld [vmem:[%s794 + $0x18] sm:$0xf]
        %v1349 = vld [vmem:[%s794 + $0x1c] sm:$0xf]
        %v1350 = vld [vmem:[%s797] sm:$0x1]
        %v1352 = vperm.slane %v1350, 0
        %v1362 = vunpack.c.l.b16 %v1342
        %v1363 = vunpack.c.l.b16 %v1343
        %v1364 = vunpack.c.l.b16 %v1344
        %v1365 = vunpack.c.l.b16 %v1345
        %v1366 = vunpack.c.l.b16 %v1346
        %v1367 = vunpack.c.l.b16 %v1347
        %v1368 = vunpack.c.l.b16 %v1348
        %v1369 = vunpack.c.l.b16 %v1349
        %v1370 = vpack.c.b16 %v1363, %v1362
        %v1371 = vpack.c.b16 %v1365, %v1364
        %v1372 = vpack.c.b16 %v1367, %v1366
        %v1373 = vpack.c.b16 %v1369, %v1368
        %vm1378 = vcmask 523264
        %v1380 = vsel %vm1378, %v1341, 0
        %1382 = vmatpush.bf16.msra.mxu0 0
        %1383 = vmatpush.bf16.msra.mxu0 0
        %1384 = vmatpush.bf16.msra.mxu0 0
        %1385 = vmatpush.bf16.msra.mxu0 0
        %1386 = vmatpush.bf16.msra.mxu0 %v1373
        %1387 = vmatpush.bf16.msra.mxu0 %v1372
        %1388 = vmatpush.bf16.msra.mxu0 %v1371
        %1389 = vmatpush.bf16.msra.mxu0 %v1370
        %1390 = vmatmul.bf16.gmra.mxu0 %v1380
        %v1391 = vpop.f32.mrf.mxu0
        %v1392 = vadd.f32 %v1352, %v1391
        %v1393 = vpop.f32.mrf.mxu0
        %v1394 = vadd.f32 %v1352, %v1393
        %1395 = vdwg.mxu0
        %v1396 = vadd.f32 %v1283, %v1392
        %v1397 = vadd.f32 %v1284, %v1394
        %v1398 = vld [vmem:[%s800] sm:$0x1]
        %v1399 = vld [vmem:[%s675] sm:$0x1]
        %v1400 = vsel %vm895, %v1396, 0.0
        %1401 = vadd.xlane.f32.xlu0 %v1400
        %v1402 = vpop.xlane.xlu0 %1401
        %v1403 = vsel %vm895, %v1397, 0.0
        %1404 = vadd.xlane.f32.xlu0 %v1403
        %v1405 = vpop.xlane.xlu0 %1404
        %v1406 = vmul.f32 %v1402, %v1236
        %v1407 = vmul.f32 %v1405, %v1236
        %v1408 = vsub.f32 %v1396, %v1406
        %v1409 = vsub.f32 %v1397, %v1407
        %v1410 = vmul.f32 %v1408, %v1408
        %v1411 = vmul.f32 %v1409, %v1409
        %v1412 = vsel %vm895, %v1410, 0.0
        %1413 = vadd.xlane.f32.xlu0 %v1412
        %v1414 = vpop.xlane.xlu0 %1413
        %v1415 = vsel %vm895, %v1411, 0.0
        %1416 = vadd.xlane.f32.xlu0 %v1415
        %v1417 = vpop.xlane.xlu0 %1416
        %v1418 = vmul.f32 %v1414, %v1236
        %v1419 = vmul.f32 %v1417, %v1236
        %v1420 = vadd.f32 %v1418, 1e-12
        %v1421 = vadd.f32 %v1419, 1e-12
        %v1422 = vrsqrt.pop %v1420
        %v1423 = vmul.f32 %v1422, %v1420
        %v1424 = vmul.f32 %v1423, %v1422
        %v1425 = vmul.f32 0.5, %v1424
        %v1426 = vsub.f32 1.5, %v1425
        %v1427 = vmul.f32 %v1422, %v1426
        %vm1428 = vweird.f32 %v1420
        %vm1429 = vweird.f32 %v1422
        %vm1430 = vmor %vm1428, %vm1429
        %v1431 = vsel %vm1430, %v1422, %v1427
        %v1432 = vrsqrt.pop %v1421
        %v1433 = vmul.f32 %v1432, %v1421
        %v1434 = vmul.f32 %v1433, %v1432
        %v1435 = vmul.f32 0.5, %v1434
        %v1436 = vsub.f32 1.5, %v1435
        %v1437 = vmul.f32 %v1432, %v1436
        %vm1438 = vweird.f32 %v1421
        %vm1439 = vweird.f32 %v1432
        %vm1440 = vmor %vm1438, %vm1439
        %v1441 = vsel %vm1440, %v1432, %v1437
        %v1442 = vmul.f32 %v1408, %v1431
        %v1443 = vmul.f32 %v1409, %v1441
        %v1445 = vperm.slane %v1398, 0
        %v1447 = vmul.f32 %v1442, %v1445
        %v1448 = vmul.f32 %v1443, %v1445
        %v1450 = vperm.slane %v1399, 0
        %v1452 = vadd.f32 %v1447, %v1450
        %v1453 = vadd.f32 %v1448, %v1450
        %1454 = vst.msk [vmem:[#allocation2] sm:$0xff] %vm895, %v1452
        %1455 = vst.msk [vmem:[#allocation2 + $0x8] sm:$0xff] %vm895, %v1453
        %p1456 = scmp.eq.s32.totalorder %s38, 1
        // Predicated region
        $region109: #{tpu_custom_call.1} parent=83 // pred_check
          %p1457 = pneg %p1456
        $region110: #{tpu_custom_call.1} parent=83 // pred_check_branch
          %1459 = sbr.rel (%p1457) target = $region112
        $region111: #{tpu_custom_call.1} parent=83 // pred_region
          %v1462 = vrot.slane %v1453, 7
          %vm1463 = vcmask 1041409
          %v1464 = vsel %vm1463, %v1462, %v1452
          %vm1466 = vcmask 254976
          %1467 = vst.msk [vmem:[#allocation12] sm:$0x3] %vm1466, %v1464
        $region112: #{tpu_custom_call.1} parent=83 // pred_fallthru
          _
        // Predicated region
        $region113: #{tpu_custom_call.1} parent=83 // pred_check
          %p1468 = pneg %p469
        $region114: #{tpu_custom_call.1} parent=83 // pred_check_branch
          %1470 = sbr.rel (%p1468) target = $region116
        $region115: #{tpu_custom_call.1} parent=83 // pred_region
          %1472 = vsyncadd [#allocation5], 0
          %s1473 = smul.addr %s37, 2
          %s1474 = scalar_lea.hbm %s16, %s1473
          %s1476 = sshll.u32 [#allocation12], 4
          %s1477 = int_to_ptr.vmem [resolvable:$true] %s1476
          %s1478 = sshll.u32 %s1474, 4
          %s1479 = int_to_ptr.hbm [resolvable:$true] %s1478
          %1481 = dma.vmem_to_hbm [thread:$0]  %s1477, 32, %s1479, [#allocation5]
        $region116: #{tpu_custom_call.1} parent=83 // pred_fallthru
          _
        // Predicated region
        $region117: #{tpu_custom_call.1} parent=83 // pred_check
          %p1482 = pneg %p469
        $region118: #{tpu_custom_call.1} parent=83 // pred_check_branch
          %1484 = sbr.rel (%p1482) target = $region120
        $region119: #{tpu_custom_call.1} parent=83 // pred_region
          %1486 = dma.done [#allocation5], 32
        $region120: #{tpu_custom_call.1} parent=83 // pred_fallthru
          _
      $region84: #{tpu_custom_call.1} parent=5 // pred_fallthru
        _
      %p1487 = scmp.le.s32.totalorder 2, %s28
      // Predicated region
      $region121: #{tpu_custom_call.1} parent=5 // pred_check
        %p1488 = pneg %p1487
      $region122: #{tpu_custom_call.1} parent=5 // pred_check_branch
        %1490 = sbr.rel (%p1488) target = $region124
      $region123: #{tpu_custom_call.1} parent=5 // pred_region
        %s1491 = ssub.s32 %s28, 2
      $region124: #{tpu_custom_call.1} parent=5 // pred_fallthru
        _
    $region6: #{tpu_custom_call.1} parent=1 // loop_footer
      %s32 = sadd.s32 1, %s28
    $region7: #{tpu_custom_call.1} parent=1 // loop_footer_branch
      %27 = sbr.rel target = $region3
    $region8: #{tpu_custom_call.1} parent=1 // loop_exit
      _
    %1492 = vsyncpa [#allocation4], 1
    %s1493 = scalar_lea.sflag [#allocation4], 1
    %1494 = vsyncpa %s1493, 1
    %1495 = vsyncpa [#allocation7], 1
    %1496 = vsyncpa [#allocation10], 1
    %s1497 = scalar_lea.sflag [#allocation10], 1
    %1498 = vsyncpa %s1497, 1
    %1499 = vsyncpa [#allocation5], 1
    %s1500 = scalar_lea.sflag [#allocation5], 1
    %1501 = vsyncpa %s1500, 1

</llo_original>
